<compile_context>
chip_gen: v7x
topology: tpu7x:2x2x1
jax: 0.10.0
libtpu: 0.0.40
codegen_flags: <defaults>
</compile_context>

<pallas_src>
import jax
import jax.numpy as jnp
from jax.experimental import pallas as pl
from jax.experimental.pallas import tpu as pltpu


def _round_up(x, m):
    return (x + m - 1) // m * m


def _link_predictor_kernel(hu_ref, hv_ref, hp_ref,
                           w1a_ref, w1b_ref, b1_ref,
                           w2_ref, b2_ref,
                           w3_ref, b3_ref,
                           out_ref):
    # Elementwise product of node embeddings in f32 (VPU), then cast the MXU
    # operands to bf16 in-kernel (free filler; avoids a wrapper-side HBM pass).
    h_uv = hu_ref[...] * hv_ref[...]
    h_uv_b = h_uv.astype(jnp.bfloat16)
    h_p_b = hp_ref[...].astype(jnp.bfloat16)

    # Layer 1: concat([h_uv, h_path]) @ W1  ==  h_uv @ W1a + h_path @ W1b
    # (bf16 operands, f32 MXU accumulate; no materialized concat).
    x = jnp.dot(h_uv_b, w1a_ref[...], preferred_element_type=jnp.float32)
    x = x + jnp.dot(h_p_b, w1b_ref[...], preferred_element_type=jnp.float32)
    x = jnp.maximum(x + b1_ref[...], 0.0)

    # Layer 2 (bf16 operands, f32 accumulate, f32 bias/ReLU).
    x = jnp.dot(x.astype(jnp.bfloat16), w2_ref[...],
                preferred_element_type=jnp.float32)
    x = jnp.maximum(x + b2_ref[...], 0.0)

    # Layer 3 (H -> 1): VPU multiply + cross-lane reduce instead of a 1-wide
    # MXU matmul.
    logits = jnp.sum(x * w3_ref[...], axis=-1, keepdims=True) + b3_ref[...]

    out_ref[...] = jax.nn.sigmoid(logits).astype(out_ref.dtype)


def link_predictor_pallas(h_u, h_v, h_path, params, *, tile_cap=16384):
    """Fused forward of LinkPredictor. Returns shape (N,) like .squeeze(-1).

    Inputs are streamed in their native dtype (no wrapper-side cast / pad);
    the batch is tiled along a single "parallel" grid axis.
    """
    w1, b1, w2, b2, w3, b3 = params
    n, e = h_u.shape
    hidden = w2.shape[0]

    # Row tile: big enough for multi-MiB DMAs (mem-bound regime), capped so the
    # double-buffered I/O fits comfortably in VMEM on all generations, and
    # sized so the grid keeps >= 4 steps when the batch allows (v7x 2-TC
    # sharding via "parallel").  Multiple of 128 keeps the (8,128) constraint
    # satisfied for both f32 and any packed dtype.
    tile = min(tile_cap, _round_up(pl.cdiv(n, 4), 128))
    tile = max(tile, 128)
    grid = (pl.cdiv(n, tile),)   # ragged last block: Pallas masks its writes

    # Weights/biases: tiny, cast once here, VMEM-resident across grid steps
    # (constant index_maps).  W1 is split so the kernel never builds the
    # concatenated feature tensor.
    w1a = w1[:e].astype(jnp.bfloat16)              # (E, H)  multiplies h_u*h_v
    w1b = w1[e:].astype(jnp.bfloat16)              # (E, H)  multiplies h_path
    w2b = w2.astype(jnp.bfloat16)                  # (H, H)
    b1f = b1.reshape(1, hidden).astype(jnp.float32)
    b2f = b2.reshape(1, hidden).astype(jnp.float32)
    w3r = w3.reshape(1, hidden).astype(jnp.float32)  # row vector for VPU mul
    b3f = b3.reshape(1, 1).astype(jnp.float32)

    # VMEM budget: double-buffered input streams + output + f32 intermediates,
    # with headroom.  Capped at 48 MiB so it stays under v7x's 64 MiB physical
    # VMEM and well under v5e/v6e's 128 MiB; floor at the 32 MiB default.
    in_itemsize = jnp.dtype(h_u.dtype).itemsize
    io_bytes = 2 * (3 * tile * e * in_itemsize + tile * 4)
    scratch_bytes = 6 * tile * max(hidden, e) * 4
    vmem_limit = min(max(32 << 20, io_bytes + scratch_bytes + (4 << 20)), 48 << 20)

    row_spec = pl.BlockSpec((tile, e), lambda i: (i, 0))

    def full_spec(shape):
        # Constant index_map -> block never changes -> weights stay VMEM
        # resident across grid steps (copied once).
        return pl.BlockSpec(shape, lambda i: (0, 0))

    out = pl.pallas_call(
        _link_predictor_kernel,
        grid=grid,
        in_specs=[row_spec, row_spec, row_spec,
                  full_spec(w1a.shape), full_spec(w1b.shape), full_spec(b1f.shape),
                  full_spec(w2b.shape), full_spec(b2f.shape),
                  full_spec(w3r.shape), full_spec(b3f.shape)],
        out_specs=pl.BlockSpec((tile, 1), lambda i: (i, 0)),
        out_shape=jax.ShapeDtypeStruct((n, 1), jnp.float32),
        compiler_params=pltpu.CompilerParams(
            dimension_semantics=("parallel",),
            vmem_limit_bytes=int(vmem_limit)),
    )(h_u, h_v, h_path, w1a, w1b, b1f, w2b, b2f, w3r, b3f)

    return out[:, 0]  # squeeze(-1)


def link_predictor_ref(h_u, h_v, h_path, params):
    """Pure-JAX f32 reference (original module semantics)."""
    w1, b1, w2, b2, w3, b3 = params
    combined = jnp.concatenate([h_u * h_v, h_path], axis=-1)
    x = jnp.maximum(combined @ w1 + b1, 0.0)
    x = jnp.maximum(x @ w2 + b2, 0.0)
    x = jax.nn.sigmoid(x @ w3 + b3)
    return x[:, 0]


def init_params(key, embed_dim, hidden_dim):
    """Deterministic synthetic weights. PyTorch Linear weight (out,in) is kept
    transposed here as (in,out)."""
    k1, k2, k3, k4, k5, k6 = jax.random.split(key, 6)
    in1 = embed_dim * 2
    w1 = jax.random.normal(k1, (in1, hidden_dim), jnp.float32) * (1.0 / jnp.sqrt(in1))
    b1 = jax.random.normal(k2, (1, hidden_dim), jnp.float32) * 0.01
    w2 = jax.random.normal(k3, (hidden_dim, hidden_dim), jnp.float32) * (1.0 / jnp.sqrt(hidden_dim))
    b2 = jax.random.normal(k4, (1, hidden_dim), jnp.float32) * 0.01
    w3 = jax.random.normal(k5, (hidden_dim, 1), jnp.float32) * (1.0 / jnp.sqrt(hidden_dim))
    b3 = jax.random.normal(k6, (1, 1), jnp.float32) * 0.01
    return (w1, b1, w2, b2, w3, b3)


if __name__ == "__main__":
    # concat(h_u*h_v, h_path) must have embed_dim*2 features -> path dim == embed_dim.
    batch = 300          # not a multiple of the tile: exercises the ragged last block
    embed_dim = 32       # also path_embed_dim
    hidden_dim = 32

    key = jax.random.PRNGKey(0)
    kx, ky, kz, kp = jax.random.split(key, 4)
    h_u = jax.random.normal(kx, (batch, embed_dim), jnp.float32)
    h_v = jax.random.normal(ky, (batch, embed_dim), jnp.float32)
    h_path = jax.random.normal(kz, (batch, embed_dim), jnp.float32)
    params = init_params(kp, embed_dim, hidden_dim)

    # With batch=300 the tile heuristic picks tile=128 -> grid of 3 steps, the
    # last of which is ragged (44 valid rows) -> exercises masked writes.
    out = link_predictor_pallas(h_u, h_v, h_path, params)
    jax.block_until_ready(out)

    ref = link_predictor_ref(h_u, h_v, h_path, params)
    assert out.shape == (batch,)
    # MXU operands are bf16 in the kernel (product computed in f32 first) ->
    # compare against the f32 module reference with a bf16-appropriate tolerance.
    assert jnp.allclose(out, ref, atol=2e-2, rtol=0.0), "mismatch vs reference"

    print("KERNEL_OK")
</pallas_src>

<mosaic_0001>
module attributes {stable_mosaic.version = 11 : i64} {
  func.func @_link_predictor_kernel(%arg0: i32, %arg1: memref<128x32xf32, #tpu.memory_space<vmem>>, %arg2: memref<128x32xf32, #tpu.memory_space<vmem>>, %arg3: memref<128x32xf32, #tpu.memory_space<vmem>>, %arg4: memref<32x32xbf16, #tpu.memory_space<vmem>>, %arg5: memref<32x32xbf16, #tpu.memory_space<vmem>>, %arg6: memref<1x32xf32, #tpu.memory_space<vmem>>, %arg7: memref<32x32xbf16, #tpu.memory_space<vmem>>, %arg8: memref<1x32xf32, #tpu.memory_space<vmem>>, %arg9: memref<1x32xf32, #tpu.memory_space<vmem>>, %arg10: memref<1x1xf32, #tpu.memory_space<vmem>>, %arg11: memref<128x1xf32, #tpu.memory_space<vmem>>) attributes {dimension_semantics = [#tpu.dimension_semantics<parallel>], iteration_bounds = array<i64: 3>, scalar_prefetch = 0 : i64, scratch_operands = 0 : i64, tpu.core_type = #tpu.core_type<tc>, window_params = [{transform_indices = @transform_0, window_bounds = array<i64: 128, 32>}, {transform_indices = @transform_1, window_bounds = array<i64: 128, 32>}, {transform_indices = @transform_2, window_bounds = array<i64: 128, 32>}, {pipeline_mode = #tpu.pipeline_mode<synchronous>, transform_indices = @transform_3, window_bounds = array<i64: 32, 32>}, {pipeline_mode = #tpu.pipeline_mode<synchronous>, transform_indices = @transform_4, window_bounds = array<i64: 32, 32>}, {pipeline_mode = #tpu.pipeline_mode<synchronous>, transform_indices = @transform_5, window_bounds = array<i64: 1, 32>}, {pipeline_mode = #tpu.pipeline_mode<synchronous>, transform_indices = @transform_6, window_bounds = array<i64: 32, 32>}, {pipeline_mode = #tpu.pipeline_mode<synchronous>, transform_indices = @transform_7, window_bounds = array<i64: 1, 32>}, {pipeline_mode = #tpu.pipeline_mode<synchronous>, transform_indices = @transform_8, window_bounds = array<i64: 1, 32>}, {pipeline_mode = #tpu.pipeline_mode<synchronous>, transform_indices = @transform_9, window_bounds = array<i64: 1, 1>}, {transform_indices = @transform_10, window_bounds = array<i64: 128, 1>}]} {
    %c0 = arith.constant 0 : index
    %c0_0 = arith.constant 0 : index
    %0 = vector.load %arg1[%c0, %c0_0] : memref<128x32xf32, #tpu.memory_space<vmem>>, vector<128x32xf32>
    %c0_1 = arith.constant 0 : index
    %c0_2 = arith.constant 0 : index
    %1 = vector.load %arg2[%c0_1, %c0_2] : memref<128x32xf32, #tpu.memory_space<vmem>>, vector<128x32xf32>
    %2 = arith.mulf %0, %1 : vector<128x32xf32>
    %3 = arith.truncf %2 : vector<128x32xf32> to vector<128x32xbf16>
    %c0_3 = arith.constant 0 : index
    %c0_4 = arith.constant 0 : index
    %4 = vector.load %arg3[%c0_3, %c0_4] : memref<128x32xf32, #tpu.memory_space<vmem>>, vector<128x32xf32>
    %5 = arith.truncf %4 : vector<128x32xf32> to vector<128x32xbf16>
    %c0_5 = arith.constant 0 : index
    %c0_6 = arith.constant 0 : index
    %6 = vector.load %arg4[%c0_5, %c0_6] : memref<32x32xbf16, #tpu.memory_space<vmem>>, vector<32x32xbf16>
    %cst = arith.constant dense<0.000000e+00> : vector<128x32xf32>
    %7 = tpu.matmul %3, %6, %cst {dimension_numbers = #tpu.dot_dimension_numbers<[1], [0], [0], [1], [0, 0, 1, 1], [], []>} : vector<128x32xbf16>, vector<32x32xbf16>, vector<128x32xf32> -> vector<128x32xf32>
    %c0_7 = arith.constant 0 : index
    %c0_8 = arith.constant 0 : index
    %8 = vector.load %arg5[%c0_7, %c0_8] : memref<32x32xbf16, #tpu.memory_space<vmem>>, vector<32x32xbf16>
    %cst_9 = arith.constant dense<0.000000e+00> : vector<128x32xf32>
    %9 = tpu.matmul %5, %8, %cst_9 {dimension_numbers = #tpu.dot_dimension_numbers<[1], [0], [0], [1], [0, 0, 1, 1], [], []>} : vector<128x32xbf16>, vector<32x32xbf16>, vector<128x32xf32> -> vector<128x32xf32>
    %10 = arith.addf %7, %9 : vector<128x32xf32>
    %c0_10 = arith.constant 0 : index
    %c0_11 = arith.constant 0 : index
    %11 = vector.load %arg6[%c0_10, %c0_11] : memref<1x32xf32, #tpu.memory_space<vmem>>, vector<1x32xf32>
    %12 = vector.broadcast %11 : vector<1x32xf32> to vector<128x32xf32>
    %13 = arith.addf %10, %12 : vector<128x32xf32>
    %cst_12 = arith.constant 0.000000e+00 : f32
    %14 = vector.broadcast %cst_12 : f32 to vector<128x32xf32>
    %15 = arith.maximumf %13, %14 : vector<128x32xf32>
    %16 = arith.truncf %15 : vector<128x32xf32> to vector<128x32xbf16>
    %c0_13 = arith.constant 0 : index
    %c0_14 = arith.constant 0 : index
    %17 = vector.load %arg7[%c0_13, %c0_14] : memref<32x32xbf16, #tpu.memory_space<vmem>>, vector<32x32xbf16>
    %cst_15 = arith.constant dense<0.000000e+00> : vector<128x32xf32>
    %18 = tpu.matmul %16, %17, %cst_15 {dimension_numbers = #tpu.dot_dimension_numbers<[1], [0], [0], [1], [0, 0, 1, 1], [], []>} : vector<128x32xbf16>, vector<32x32xbf16>, vector<128x32xf32> -> vector<128x32xf32>
    %c0_16 = arith.constant 0 : index
    %c0_17 = arith.constant 0 : index
    %19 = vector.load %arg8[%c0_16, %c0_17] : memref<1x32xf32, #tpu.memory_space<vmem>>, vector<1x32xf32>
    %20 = vector.broadcast %19 : vector<1x32xf32> to vector<128x32xf32>
    %21 = arith.addf %18, %20 : vector<128x32xf32>
    %cst_18 = arith.constant 0.000000e+00 : f32
    %22 = vector.broadcast %cst_18 : f32 to vector<128x32xf32>
    %23 = arith.maximumf %21, %22 : vector<128x32xf32>
    %c0_19 = arith.constant 0 : index
    %c0_20 = arith.constant 0 : index
    %24 = vector.load %arg9[%c0_19, %c0_20] : memref<1x32xf32, #tpu.memory_space<vmem>>, vector<1x32xf32>
    %25 = vector.broadcast %24 : vector<1x32xf32> to vector<128x32xf32>
    %26 = arith.mulf %23, %25 : vector<128x32xf32>
    %cst_21 = arith.constant dense<0.000000e+00> : vector<128xf32>
    %27 = vector.multi_reduction <add>, %26, %cst_21 [1] : vector<128x32xf32> to vector<128xf32>
    %28 = vector.shape_cast %27 : vector<128xf32> to vector<128x1xf32>
    %c0_22 = arith.constant 0 : index
    %c0_23 = arith.constant 0 : index
    %29 = vector.load %arg10[%c0_22, %c0_23] : memref<1x1xf32, #tpu.memory_space<vmem>>, vector<1x1xf32>
    %30 = vector.broadcast %29 : vector<1x1xf32> to vector<128x1xf32>
    %31 = arith.addf %28, %30 : vector<128x1xf32>
    %32 = arith.negf %31 : vector<128x1xf32>
    %33 = math.exp %32 : vector<128x1xf32>
    %cst_24 = arith.constant 1.000000e+00 : f32
    %34 = vector.broadcast %cst_24 : f32 to vector<128x1xf32>
    %35 = arith.addf %34, %33 : vector<128x1xf32>
    %36 = arith.divf %34, %35 : vector<128x1xf32>
    %c0_25 = arith.constant 0 : index
    %c0_26 = arith.constant 0 : index
    %37 = vector.load %arg11[%c0_25, %c0_26] : memref<128x1xf32, #tpu.memory_space<vmem>>, vector<128x1xf32>
    tpu.vector_store %arg11[%c0_25, %c0_26], %36 {strides = array<i32>} : memref<128x1xf32, #tpu.memory_space<vmem>>, vector<128x1xf32>,
    return
  }
  func.func @transform_0(%arg0: i32) -> (i32, i32) {
    %c0_i32 = arith.constant 0 : i32
    %c0_i32_0 = arith.constant 0 : i32
    return %arg0, %c0_i32 : i32, i32
  }
  func.func @transform_1(%arg0: i32) -> (i32, i32) {
    %c0_i32 = arith.constant 0 : i32
    %c0_i32_0 = arith.constant 0 : i32
    return %arg0, %c0_i32 : i32, i32
  }
  func.func @transform_2(%arg0: i32) -> (i32, i32) {
    %c0_i32 = arith.constant 0 : i32
    %c0_i32_0 = arith.constant 0 : i32
    return %arg0, %c0_i32 : i32, i32
  }
  func.func @transform_3(%arg0: i32) -> (i32, i32) {
    %c0_i32 = arith.constant 0 : i32
    %c0_i32_0 = arith.constant 0 : i32
    %c0_i32_1 = arith.constant 0 : i32
    return %c0_i32, %c0_i32_0 : i32, i32
  }
  func.func @transform_4(%arg0: i32) -> (i32, i32) {
    %c0_i32 = arith.constant 0 : i32
    %c0_i32_0 = arith.constant 0 : i32
    %c0_i32_1 = arith.constant 0 : i32
    return %c0_i32, %c0_i32_0 : i32, i32
  }
  func.func @transform_5(%arg0: i32) -> (i32, i32) {
    %c0_i32 = arith.constant 0 : i32
    %c0_i32_0 = arith.constant 0 : i32
    %c0_i32_1 = arith.constant 0 : i32
    return %c0_i32, %c0_i32_0 : i32, i32
  }
  func.func @transform_6(%arg0: i32) -> (i32, i32) {
    %c0_i32 = arith.constant 0 : i32
    %c0_i32_0 = arith.constant 0 : i32
    %c0_i32_1 = arith.constant 0 : i32
    return %c0_i32, %c0_i32_0 : i32, i32
  }
  func.func @transform_7(%arg0: i32) -> (i32, i32) {
    %c0_i32 = arith.constant 0 : i32
    %c0_i32_0 = arith.constant 0 : i32
    %c0_i32_1 = arith.constant 0 : i32
    return %c0_i32, %c0_i32_0 : i32, i32
  }
  func.func @transform_8(%arg0: i32) -> (i32, i32) {
    %c0_i32 = arith.constant 0 : i32
    %c0_i32_0 = arith.constant 0 : i32
    %c0_i32_1 = arith.constant 0 : i32
    return %c0_i32, %c0_i32_0 : i32, i32
  }
  func.func @transform_9(%arg0: i32) -> (i32, i32) {
    %c0_i32 = arith.constant 0 : i32
    %c0_i32_0 = arith.constant 0 : i32
    %c0_i32_1 = arith.constant 0 : i32
    return %c0_i32, %c0_i32_0 : i32, i32
  }
  func.func @transform_10(%arg0: i32) -> (i32, i32) {
    %c0_i32 = arith.constant 0 : i32
    %c0_i32_0 = arith.constant 0 : i32
    return %arg0, %c0_i32 : i32, i32
  }
}

</mosaic_0001>

<llo_original>
// kernel: tpu_custom_call.1
$region0: #{tpu_custom_call.1}
  #allocation0 [shape = 'u32[]', space=smem, size = 0x4, offset = 0x4, fixed_abs, tag = 'smem constant byte address 0x4 - core index']
  #allocation1 [shape = 'u32[144,128]{1,0:T(1,128)}', space=vmem, size = 0x12000, scoped, tag = 'internal scratch']
  #allocation2 [shape = 'f32[1,1]{1,0:T(1,128)S(1)}', space=vmem, size = 0x200, scoped, tag = 'scoped memory for tpu_custom_call.1']
  %s0 = inlined_call_operand.vmem [shape: f32[300,32], index: 0, kind: input, shape index: {}]
  %s1 = inlined_call_operand.vmem [shape: f32[300,32], index: 1, kind: input, shape index: {}]
  %s2 = inlined_call_operand.vmem [shape: f32[300,32], index: 2, kind: input, shape index: {}]
  %s3 = inlined_call_operand.vmem [shape: bf16[32,32], index: 3, kind: input, shape index: {}]
  %s4 = inlined_call_operand.vmem [shape: bf16[32,32], index: 4, kind: input, shape index: {}]
  %s5 = inlined_call_operand.vmem [shape: f32[1,32], index: 5, kind: input, shape index: {}]
  %s6 = inlined_call_operand.vmem [shape: bf16[32,32], index: 6, kind: input, shape index: {}]
  %s7 = inlined_call_operand.vmem [shape: f32[1,32], index: 7, kind: input, shape index: {}]
  %s8 = inlined_call_operand.vmem [shape: f32[1,32], index: 8, kind: input, shape index: {}]
  %s9 = inlined_call_operand.<no memory space> [shape: f32[1,1], index: 9, kind: input, shape index: {}]
  %s10 = inlined_call_operand.vmem [shape: f32[300,1], index: 10, kind: output, shape index: {}]
  %s11 = sld [smem:[#allocation0]]
  $region121: #{tpu_custom_call.1} parent=0
    _
  %s13 = ssub.s32 1, %s11
  %s14 = scalar_select 0, %s13, %s11
  %v15 = vstv %s9
  %16 = vst [vmem:[#allocation2] sm:$0x1] %v15
  $region1: #{tpu_custom_call.1} parent=0
    #allocation3 [shape = 'u8[131072]{0}', space=vmem, size = 0x20000, scoped, tag = 'output window, operand 0']
    loop: start=0, step=1, limit=5
    $region2: #{tpu_custom_call.1} parent=1 // loop_pre_header
      _
    $region3: #{tpu_custom_call.1} parent=1 // loop_header
      %s18 = sphi 0, %s22
      %p19 = scmp.ge.s32.totalorder %s18, 5
      %s28 = sphi 0, %s30
      %s31 = sphi 0, %s28
      %s32 = sphi 0, %s31
      %s48 = sphi 0, %s32
      %s54 = sphi 0, %s56
      %s57 = sphi 0, %s54
      %s58 = sphi 0, %s57
      %s74 = sphi 0, %s58
      %s80 = sphi 0, %s82
      %s83 = sphi 0, %s80
      %s84 = sphi 0, %s83
      %s100 = sphi 0, %s84
      %s104 = sphi 0, %s104
      %s106 = sphi 0, %s104
      %s107 = sphi 0, %s106
      %s121 = sphi 0, %s107
      %s125 = sphi 0, %s125
      %s127 = sphi 0, %s125
      %s128 = sphi 0, %s127
      %s142 = sphi 0, %s128
      %s146 = sphi 0, %s146
      %s148 = sphi 0, %s146
      %s149 = sphi 0, %s148
      %s163 = sphi 0, %s149
      %s167 = sphi 0, %s167
      %s169 = sphi 0, %s167
      %s170 = sphi 0, %s169
      %s184 = sphi 0, %s170
      %s188 = sphi 0, %s188
      %s190 = sphi 0, %s188
      %s191 = sphi 0, %s190
      %s205 = sphi 0, %s191
      %s209 = sphi 0, %s209
      %s211 = sphi 0, %s209
      %s212 = sphi 0, %s211
      %s226 = sphi 0, %s212
      %s230 = sphi 0, %s230
      %s232 = sphi 0, %s230
      %s233 = sphi 0, %s232
      %s247 = sphi 0, %s233
      %s253 = sphi 0, %s255
      %s256 = sphi 0, %s253
      %s257 = sphi 0, %s256
      %s273 = sphi 0, %s257
    $region4: #{tpu_custom_call.1} parent=1 // loop_header_branch
      %21 = sbr.rel (%p19) target = $region8
    $region5: #{tpu_custom_call.1} parent=1 // loop_body
      %s23 = ssub.s32 %s18, 1
      %s24 = ssub.s32 %s18, 2
      %s25 = sadd.s32 %s18, 1
      %s26 = ssub.s32 %s18, %s25
      %p27 = scmp.eq.s32.totalorder %s26, 0
      %s29 = sadd.s32 %s28, 1
      %s30 = scalar_select %p27, %s28, %s29
      %p33 = pneg %p27
      %p34 = scmp.eq.s32.totalorder %s18, 2
      %p35 = por %p33, %p34
      %p36 = scmp.ne.s32.totalorder %s28, %s31
      %p37 = scmp.eq.s32.totalorder %s18, 0
      %p38 = por %p36, %p37
      %p39 = scmp.ne.s32.totalorder %s28, %s31
      %p40 = scmp.eq.s32.totalorder %s23, 2
      %p41 = por %p39, %p40
      %p42 = scmp.ne.s32.totalorder %s31, %s32
      %p43 = scmp.eq.s32.totalorder %s23, 0
      %p44 = por %p42, %p43
      %p45 = scmp.ne.s32.totalorder %s31, %s32
      %p46 = scmp.eq.s32.totalorder %s24, 2
      %p47 = por %p45, %p46
      %p49 = scmp.ne.s32.totalorder %s32, %s48
      %p50 = scmp.eq.s32.totalorder %s24, 0
      %p51 = por %p49, %p50
      %s52 = ssub.s32 %s18, %s25
      %p53 = scmp.eq.s32.totalorder %s52, 0
      %s55 = sadd.s32 %s54, 1
      %s56 = scalar_select %p53, %s54, %s55
      %p59 = pneg %p53
      %p60 = scmp.eq.s32.totalorder %s18, 2
      %p61 = por %p59, %p60
      %p62 = scmp.ne.s32.totalorder %s54, %s57
      %p63 = scmp.eq.s32.totalorder %s18, 0
      %p64 = por %p62, %p63
      %p65 = scmp.ne.s32.totalorder %s54, %s57
      %p66 = scmp.eq.s32.totalorder %s23, 2
      %p67 = por %p65, %p66
      %p68 = scmp.ne.s32.totalorder %s57, %s58
      %p69 = scmp.eq.s32.totalorder %s23, 0
      %p70 = por %p68, %p69
      %p71 = scmp.ne.s32.totalorder %s57, %s58
      %p72 = scmp.eq.s32.totalorder %s24, 2
      %p73 = por %p71, %p72
      %p75 = scmp.ne.s32.totalorder %s58, %s74
      %p76 = scmp.eq.s32.totalorder %s24, 0
      %p77 = por %p75, %p76
      %s78 = ssub.s32 %s18, %s25
      %p79 = scmp.eq.s32.totalorder %s78, 0
      %s81 = sadd.s32 %s80, 1
      %s82 = scalar_select %p79, %s80, %s81
      %p85 = pneg %p79
      %p86 = scmp.eq.s32.totalorder %s18, 2
      %p87 = por %p85, %p86
      %p88 = scmp.ne.s32.totalorder %s80, %s83
      %p89 = scmp.eq.s32.totalorder %s18, 0
      %p90 = por %p88, %p89
      %p91 = scmp.ne.s32.totalorder %s80, %s83
      %p92 = scmp.eq.s32.totalorder %s23, 2
      %p93 = por %p91, %p92
      %p94 = scmp.ne.s32.totalorder %s83, %s84
      %p95 = scmp.eq.s32.totalorder %s23, 0
      %p96 = por %p94, %p95
      %p97 = scmp.ne.s32.totalorder %s83, %s84
      %p98 = scmp.eq.s32.totalorder %s24, 2
      %p99 = por %p97, %p98
      %p101 = scmp.ne.s32.totalorder %s84, %s100
      %p102 = scmp.eq.s32.totalorder %s24, 0
      %p103 = por %p101, %p102
      %s105 = sadd.s32 %s104, 1
      %p108 = scmp.eq.s32.totalorder %s18, 2
      %p109 = scmp.ne.s32.totalorder %s104, %s106
      %p110 = scmp.eq.s32.totalorder %s18, 0
      %p111 = por %p109, %p110
      %p112 = scmp.ne.s32.totalorder %s104, %s106
      %p113 = scmp.eq.s32.totalorder %s23, 2
      %p114 = por %p112, %p113
      %p115 = scmp.ne.s32.totalorder %s106, %s107
      %p116 = scmp.eq.s32.totalorder %s23, 0
      %p117 = por %p115, %p116
      %p118 = scmp.ne.s32.totalorder %s106, %s107
      %p119 = scmp.eq.s32.totalorder %s24, 2
      %p120 = por %p118, %p119
      %p122 = scmp.ne.s32.totalorder %s107, %s121
      %p123 = scmp.eq.s32.totalorder %s24, 0
      %p124 = por %p122, %p123
      %s126 = sadd.s32 %s125, 1
      %p129 = scmp.eq.s32.totalorder %s18, 2
      %p130 = scmp.ne.s32.totalorder %s125, %s127
      %p131 = scmp.eq.s32.totalorder %s18, 0
      %p132 = por %p130, %p131
      %p133 = scmp.ne.s32.totalorder %s125, %s127
      %p134 = scmp.eq.s32.totalorder %s23, 2
      %p135 = por %p133, %p134
      %p136 = scmp.ne.s32.totalorder %s127, %s128
      %p137 = scmp.eq.s32.totalorder %s23, 0
      %p138 = por %p136, %p137
      %p139 = scmp.ne.s32.totalorder %s127, %s128
      %p140 = scmp.eq.s32.totalorder %s24, 2
      %p141 = por %p139, %p140
      %p143 = scmp.ne.s32.totalorder %s128, %s142
      %p144 = scmp.eq.s32.totalorder %s24, 0
      %p145 = por %p143, %p144
      %s147 = sadd.s32 %s146, 1
      %p150 = scmp.eq.s32.totalorder %s18, 2
      %p151 = scmp.ne.s32.totalorder %s146, %s148
      %p152 = scmp.eq.s32.totalorder %s18, 0
      %p153 = por %p151, %p152
      %p154 = scmp.ne.s32.totalorder %s146, %s148
      %p155 = scmp.eq.s32.totalorder %s23, 2
      %p156 = por %p154, %p155
      %p157 = scmp.ne.s32.totalorder %s148, %s149
      %p158 = scmp.eq.s32.totalorder %s23, 0
      %p159 = por %p157, %p158
      %p160 = scmp.ne.s32.totalorder %s148, %s149
      %p161 = scmp.eq.s32.totalorder %s24, 2
      %p162 = por %p160, %p161
      %p164 = scmp.ne.s32.totalorder %s149, %s163
      %p165 = scmp.eq.s32.totalorder %s24, 0
      %p166 = por %p164, %p165
      %s168 = sadd.s32 %s167, 1
      %p171 = scmp.eq.s32.totalorder %s18, 2
      %p172 = scmp.ne.s32.totalorder %s167, %s169
      %p173 = scmp.eq.s32.totalorder %s18, 0
      %p174 = por %p172, %p173
      %p175 = scmp.ne.s32.totalorder %s167, %s169
      %p176 = scmp.eq.s32.totalorder %s23, 2
      %p177 = por %p175, %p176
      %p178 = scmp.ne.s32.totalorder %s169, %s170
      %p179 = scmp.eq.s32.totalorder %s23, 0
      %p180 = por %p178, %p179
      %p181 = scmp.ne.s32.totalorder %s169, %s170
      %p182 = scmp.eq.s32.totalorder %s24, 2
      %p183 = por %p181, %p182
      %p185 = scmp.ne.s32.totalorder %s170, %s184
      %p186 = scmp.eq.s32.totalorder %s24, 0
      %p187 = por %p185, %p186
      %s189 = sadd.s32 %s188, 1
      %p192 = scmp.eq.s32.totalorder %s18, 2
      %p193 = scmp.ne.s32.totalorder %s188, %s190
      %p194 = scmp.eq.s32.totalorder %s18, 0
      %p195 = por %p193, %p194
      %p196 = scmp.ne.s32.totalorder %s188, %s190
      %p197 = scmp.eq.s32.totalorder %s23, 2
      %p198 = por %p196, %p197
      %p199 = scmp.ne.s32.totalorder %s190, %s191
      %p200 = scmp.eq.s32.totalorder %s23, 0
      %p201 = por %p199, %p200
      %p202 = scmp.ne.s32.totalorder %s190, %s191
      %p203 = scmp.eq.s32.totalorder %s24, 2
      %p204 = por %p202, %p203
      %p206 = scmp.ne.s32.totalorder %s191, %s205
      %p207 = scmp.eq.s32.totalorder %s24, 0
      %p208 = por %p206, %p207
      %s210 = sadd.s32 %s209, 1
      %p213 = scmp.eq.s32.totalorder %s18, 2
      %p214 = scmp.ne.s32.totalorder %s209, %s211
      %p215 = scmp.eq.s32.totalorder %s18, 0
      %p216 = por %p214, %p215
      %p217 = scmp.ne.s32.totalorder %s209, %s211
      %p218 = scmp.eq.s32.totalorder %s23, 2
      %p219 = por %p217, %p218
      %p220 = scmp.ne.s32.totalorder %s211, %s212
      %p221 = scmp.eq.s32.totalorder %s23, 0
      %p222 = por %p220, %p221
      %p223 = scmp.ne.s32.totalorder %s211, %s212
      %p224 = scmp.eq.s32.totalorder %s24, 2
      %p225 = por %p223, %p224
      %p227 = scmp.ne.s32.totalorder %s212, %s226
      %p228 = scmp.eq.s32.totalorder %s24, 0
      %p229 = por %p227, %p228
      %s231 = sadd.s32 %s230, 1
      %p234 = scmp.eq.s32.totalorder %s18, 2
      %p235 = scmp.ne.s32.totalorder %s230, %s232
      %p236 = scmp.eq.s32.totalorder %s18, 0
      %p237 = por %p235, %p236
      %p238 = scmp.ne.s32.totalorder %s230, %s232
      %p239 = scmp.eq.s32.totalorder %s23, 2
      %p240 = por %p238, %p239
      %p241 = scmp.ne.s32.totalorder %s232, %s233
      %p242 = scmp.eq.s32.totalorder %s23, 0
      %p243 = por %p241, %p242
      %p244 = scmp.ne.s32.totalorder %s232, %s233
      %p245 = scmp.eq.s32.totalorder %s24, 2
      %p246 = por %p244, %p245
      %p248 = scmp.ne.s32.totalorder %s233, %s247
      %p249 = scmp.eq.s32.totalorder %s24, 0
      %p250 = por %p248, %p249
      %s251 = ssub.s32 %s18, %s25
      %p252 = scmp.eq.s32.totalorder %s251, 0
      %s254 = sadd.s32 %s253, 1
      %s255 = scalar_select %p252, %s253, %s254
      %p258 = pneg %p252
      %p259 = scmp.eq.s32.totalorder %s18, 2
      %p260 = por %p258, %p259
      %p261 = scmp.ne.s32.totalorder %s253, %s256
      %p262 = scmp.eq.s32.totalorder %s18, 0
      %p263 = por %p261, %p262
      %p264 = scmp.ne.s32.totalorder %s253, %s256
      %p265 = scmp.eq.s32.totalorder %s23, 2
      %p266 = por %p264, %p265
      %p267 = scmp.ne.s32.totalorder %s256, %s257
      %p268 = scmp.eq.s32.totalorder %s23, 0
      %p269 = por %p267, %p268
      %p270 = scmp.ne.s32.totalorder %s256, %s257
      %p271 = scmp.eq.s32.totalorder %s24, 2
      %p272 = por %p270, %p271
      %p274 = scmp.ne.s32.totalorder %s257, %s273
      %p275 = scmp.eq.s32.totalorder %s24, 0
      %p276 = por %p274, %p275
      %p277 = scmp.le.s32.totalorder 1, %s18
      %p278 = scmp.lt.s32.totalorder %s18, 4
      %p279 = pnand %p277, %p278
      %p280 = pneg %p279
      // Predicated region
      $region9: #{tpu_custom_call.1} parent=5 // pred_check
        _
      $region10: #{tpu_custom_call.1} parent=5 // pred_check_branch
        %282 = sbr.rel (%p279) target = $region12
      $region11: #{tpu_custom_call.1} parent=5 // pred_region
        %s283 = ssub.s32 %s18, 1
        // Predicated region
        $region13: #{tpu_custom_call.1} parent=11 // pred_check
          %p284 = pneg %p117
        $region14: #{tpu_custom_call.1} parent=11 // pred_check_branch
          %286 = sbr.rel (%p284) target = $region16
        $region15: #{tpu_custom_call.1} parent=11 // pred_region
          _
        $region16: #{tpu_custom_call.1} parent=11 // pred_fallthru
          _
        // Predicated region
        $region17: #{tpu_custom_call.1} parent=11 // pred_check
          %p287 = pneg %p138
        $region18: #{tpu_custom_call.1} parent=11 // pred_check_branch
          %289 = sbr.rel (%p287) target = $region20
        $region19: #{tpu_custom_call.1} parent=11 // pred_region
          _
        $region20: #{tpu_custom_call.1} parent=11 // pred_fallthru
          _
        // Predicated region
        $region21: #{tpu_custom_call.1} parent=11 // pred_check
          %p290 = pneg %p159
        $region22: #{tpu_custom_call.1} parent=11 // pred_check_branch
          %292 = sbr.rel (%p290) target = $region24
        $region23: #{tpu_custom_call.1} parent=11 // pred_region
          _
        $region24: #{tpu_custom_call.1} parent=11 // pred_fallthru
          _
        // Predicated region
        $region25: #{tpu_custom_call.1} parent=11 // pred_check
          %p293 = pneg %p180
        $region26: #{tpu_custom_call.1} parent=11 // pred_check_branch
          %295 = sbr.rel (%p293) target = $region28
        $region27: #{tpu_custom_call.1} parent=11 // pred_region
          _
        $region28: #{tpu_custom_call.1} parent=11 // pred_fallthru
          _
        // Predicated region
        $region29: #{tpu_custom_call.1} parent=11 // pred_check
          %p296 = pneg %p201
        $region30: #{tpu_custom_call.1} parent=11 // pred_check_branch
          %298 = sbr.rel (%p296) target = $region32
        $region31: #{tpu_custom_call.1} parent=11 // pred_region
          _
        $region32: #{tpu_custom_call.1} parent=11 // pred_fallthru
          _
        // Predicated region
        $region33: #{tpu_custom_call.1} parent=11 // pred_check
          %p299 = pneg %p222
        $region34: #{tpu_custom_call.1} parent=11 // pred_check_branch
          %301 = sbr.rel (%p299) target = $region36
        $region35: #{tpu_custom_call.1} parent=11 // pred_region
          _
        $region36: #{tpu_custom_call.1} parent=11 // pred_fallthru
          _
        // Predicated region
        $region37: #{tpu_custom_call.1} parent=11 // pred_check
          %p302 = pneg %p243
        $region38: #{tpu_custom_call.1} parent=11 // pred_check_branch
          %304 = sbr.rel (%p302) target = $region40
        $region39: #{tpu_custom_call.1} parent=11 // pred_region
          _
        $region40: #{tpu_custom_call.1} parent=11 // pred_fallthru
          _
      $region12: #{tpu_custom_call.1} parent=5 // pred_fallthru
        _
      %p305 = scmp.lt.s32.totalorder %s18, 3
      // Predicated region
      $region41: #{tpu_custom_call.1} parent=5 // pred_check
        %p306 = pneg %p305
      $region42: #{tpu_custom_call.1} parent=5 // pred_check_branch
        %308 = sbr.rel (%p306) target = $region44
      $region43: #{tpu_custom_call.1} parent=5 // pred_region
        // Predicated region
        $region45: #{tpu_custom_call.1} parent=43 // pred_check
          %p309 = pneg %p38
        $region46: #{tpu_custom_call.1} parent=43 // pred_check_branch
          %311 = sbr.rel (%p309) target = $region48
        $region47: #{tpu_custom_call.1} parent=43 // pred_region
          %s312 = smul.u32 16, %s18
          %s313 = ssub.s32 38, %s312
          %p314 = scmp.lt.s32.totalorder %s313, 16
          %s315 = scalar_select %p314, %s313, 16
          %s316 = smul.u32 128, %s315
          %p317 = scmp.lt.s32.totalorder %s312, 37
          %s318 = scalar_select %p317, %s312, 37
          %s319 = smul.addr %s318, 8
          %s320 = scalar_lea.vmem %s0, %s319
          %s321 = smul.u32 16, %s18
          %s322 = ssub.s32 38, %s321
          %p323 = scmp.lt.s32.totalorder %s322, 16
          %s324 = scalar_select %p323, %s322, 16
          %s325 = smul.u32 128, %s324
        $region48: #{tpu_custom_call.1} parent=43 // pred_fallthru
          _
        // Predicated region
        $region49: #{tpu_custom_call.1} parent=43 // pred_check
          %p326 = pneg %p64
        $region50: #{tpu_custom_call.1} parent=43 // pred_check_branch
          %328 = sbr.rel (%p326) target = $region52
        $region51: #{tpu_custom_call.1} parent=43 // pred_region
          %s329 = smul.u32 16, %s18
          %s330 = ssub.s32 38, %s329
          %p331 = scmp.lt.s32.totalorder %s330, 16
          %s332 = scalar_select %p331, %s330, 16
          %s333 = smul.u32 128, %s332
          %p334 = scmp.lt.s32.totalorder %s329, 37
          %s335 = scalar_select %p334, %s329, 37
          %s336 = smul.addr %s335, 8
          %s337 = scalar_lea.vmem %s1, %s336
          %s338 = smul.u32 16, %s18
          %s339 = ssub.s32 38, %s338
          %p340 = scmp.lt.s32.totalorder %s339, 16
          %s341 = scalar_select %p340, %s339, 16
          %s342 = smul.u32 128, %s341
        $region52: #{tpu_custom_call.1} parent=43 // pred_fallthru
          _
        // Predicated region
        $region53: #{tpu_custom_call.1} parent=43 // pred_check
          %p343 = pneg %p90
        $region54: #{tpu_custom_call.1} parent=43 // pred_check_branch
          %345 = sbr.rel (%p343) target = $region56
        $region55: #{tpu_custom_call.1} parent=43 // pred_region
          %s346 = smul.u32 16, %s18
          %s347 = ssub.s32 38, %s346
          %p348 = scmp.lt.s32.totalorder %s347, 16
          %s349 = scalar_select %p348, %s347, 16
          %s350 = smul.u32 128, %s349
          %p351 = scmp.lt.s32.totalorder %s346, 37
          %s352 = scalar_select %p351, %s346, 37
          %s353 = smul.addr %s352, 8
          %s354 = scalar_lea.vmem %s2, %s353
          %s355 = smul.u32 16, %s18
          %s356 = ssub.s32 38, %s355
          %p357 = scmp.lt.s32.totalorder %s356, 16
          %s358 = scalar_select %p357, %s356, 16
          %s359 = smul.u32 128, %s358
        $region56: #{tpu_custom_call.1} parent=43 // pred_fallthru
          _
      $region44: #{tpu_custom_call.1} parent=5 // pred_fallthru
        _
      %p360 = scmp.le.s32.totalorder 1, %s18
      %p361 = scmp.lt.s32.totalorder %s18, 4
      %p362 = pnand %p360, %p361
      %p363 = pneg %p362
      // Predicated region
      $region57: #{tpu_custom_call.1} parent=5 // pred_check
        _
      $region58: #{tpu_custom_call.1} parent=5 // pred_check_branch
        %365 = sbr.rel (%p362) target = $region60
      $region59: #{tpu_custom_call.1} parent=5 // pred_region
        %s366 = ssub.s32 %s18, 1
        %s367 = smul.u32 16, %s23
        %s368 = ssub.s32 38, %s367
        %p369 = scmp.lt.s32.totalorder %s368, 16
        %s370 = scalar_select %p369, %s368, 16
        %s371 = smul.u32 128, %s370
        %p372 = scmp.lt.s32.totalorder %s367, 37
        %s373 = scalar_select %p372, %s367, 37
        %s374 = smul.addr %s373, 8
        %s375 = scalar_lea.vmem %s0, %s374
        %p376 = pneg %p44
        %p377 = pneg %p41
        %s378 = smul.u32 16, %s23
        %s379 = ssub.s32 38, %s378
        %p380 = scmp.lt.s32.totalorder %s379, 16
        %s381 = scalar_select %p380, %s379, 16
        %s382 = smul.u32 128, %s381
        %p383 = scmp.lt.s32.totalorder %s378, 37
        %s384 = scalar_select %p383, %s378, 37
        %s385 = smul.addr %s384, 8
        %s386 = scalar_lea.vmem %s1, %s385
        %p387 = pneg %p70
        %p388 = pneg %p67
        %s389 = smul.u32 16, %s23
        %s390 = ssub.s32 38, %s389
        %p391 = scmp.lt.s32.totalorder %s390, 16
        %s392 = scalar_select %p391, %s390, 16
        %s393 = smul.u32 128, %s392
        %p394 = scmp.lt.s32.totalorder %s389, 37
        %s395 = scalar_select %p394, %s389, 37
        %s396 = smul.addr %s395, 8
        %s397 = scalar_lea.vmem %s2, %s396
        %p398 = pneg %p96
        %p399 = pneg %p93
        %p400 = pneg %p117
        %p401 = pneg %p114
        %p402 = pneg %p138
        %p403 = pneg %p135
        %p404 = pneg %p159
        %p405 = pneg %p156
        %p406 = pneg %p180
        %p407 = pneg %p177
        %p408 = pneg %p201
        %p409 = pneg %p198
        %p410 = pneg %p222
        %p411 = pneg %p219
        %p412 = pneg %p243
        %p413 = pneg %p240
        %p414 = pneg %p269
        %p415 = pneg %p266
        %s416 = sand.u32 %s256, 1
        %s417 = sand.u32 %s256, 1
        %s418 = smul.addr %s417, 128
        %s419 = scalar_lea.vmem [#allocation3], %s418
        %s420 = smul.u32 16, %s23
        %s421 = ssub.s32 38, %s420
        %p422 = scmp.lt.s32.totalorder %s421, 16
        %s423 = scalar_select %p422, %s421, 16
        %s424 = smul.u32 128, %s423
        %p425 = scmp.lt.s32.totalorder %s420, 37
        %s426 = scalar_select %p425, %s420, 37
        %s427 = smul.addr %s426, 8
        %s428 = scalar_lea.vmem %s0, %s427
        %s429 = smul.u32 16, %s23
        %s430 = ssub.s32 38, %s429
        %p431 = scmp.lt.s32.totalorder %s430, 16
        %s432 = scalar_select %p431, %s430, 16
        %s433 = smul.u32 128, %s432
        %s434 = smul.u32 16, %s23
        %s435 = ssub.s32 38, %s434
        %p436 = scmp.lt.s32.totalorder %s435, 16
        %s437 = scalar_select %p436, %s435, 16
        %s438 = smul.u32 128, %s437
        %p439 = scmp.lt.s32.totalorder %s434, 37
        %s440 = scalar_select %p439, %s434, 37
        %s441 = smul.addr %s440, 8
        %s442 = scalar_lea.vmem %s1, %s441
        %s443 = smul.u32 16, %s23
        %s444 = ssub.s32 38, %s443
        %p445 = scmp.lt.s32.totalorder %s444, 16
        %s446 = scalar_select %p445, %s444, 16
        %s447 = smul.u32 128, %s446
        %s448 = smul.u32 16, %s23
        %s449 = ssub.s32 38, %s448
        %p450 = scmp.lt.s32.totalorder %s449, 16
        %s451 = scalar_select %p450, %s449, 16
        %s452 = smul.u32 128, %s451
        %p453 = scmp.lt.s32.totalorder %s448, 37
        %s454 = scalar_select %p453, %s448, 37
        %s455 = smul.addr %s454, 8
        %s456 = scalar_lea.vmem %s2, %s455
        %s457 = smul.u32 16, %s23
        %s458 = ssub.s32 38, %s457
        %p459 = scmp.lt.s32.totalorder %s458, 16
        %s460 = scalar_select %p459, %s458, 16
        %s461 = smul.u32 128, %s460
        %s462 = smul.u32 16, %s23
        %s463 = ssub.s32 38, %s462
        %p464 = scmp.lt.s32.totalorder %s463, 16
        %s465 = scalar_select %p464, %s463, 16
        %s466 = smul.u32 128, %s465
        %v468 = vld [vmem:[%s428] sm:$0xff]
        %v469 = vld [vmem:[%s428 + $0x8] sm:$0xff]
        %v470 = vld [vmem:[%s428 + $0x10] sm:$0xff]
        %v471 = vld [vmem:[%s428 + $0x18] sm:$0xff]
        %v472 = vld [vmem:[%s428 + $0x20] sm:$0xff]
        %v473 = vld [vmem:[%s428 + $0x28] sm:$0xff]
        %v474 = vld [vmem:[%s428 + $0x30] sm:$0xff]
        %v475 = vld [vmem:[%s428 + $0x38] sm:$0xff]
        %v476 = vld [vmem:[%s428 + $0x40] sm:$0xff]
        %v477 = vld [vmem:[%s428 + $0x48] sm:$0xff]
        %v478 = vld [vmem:[%s428 + $0x50] sm:$0xff]
        %v479 = vld [vmem:[%s428 + $0x58] sm:$0xff]
        %v480 = vld [vmem:[%s428 + $0x60] sm:$0xff]
        %v481 = vld [vmem:[%s428 + $0x68] sm:$0xff]
        %v482 = vld [vmem:[%s428 + $0x70] sm:$0xff]
        %v483 = vld [vmem:[%s428 + $0x78] sm:$0xff]
        %v484 = vld [vmem:[%s442] sm:$0xff]
        %v485 = vld [vmem:[%s442 + $0x8] sm:$0xff]
        %v486 = vld [vmem:[%s442 + $0x10] sm:$0xff]
        %v487 = vld [vmem:[%s442 + $0x18] sm:$0xff]
        %v488 = vld [vmem:[%s442 + $0x20] sm:$0xff]
        %v489 = vld [vmem:[%s442 + $0x28] sm:$0xff]
        %v490 = vld [vmem:[%s442 + $0x30] sm:$0xff]
        %v491 = vld [vmem:[%s442 + $0x38] sm:$0xff]
        %v492 = vld [vmem:[%s442 + $0x40] sm:$0xff]
        %v493 = vld [vmem:[%s442 + $0x48] sm:$0xff]
        %v494 = vld [vmem:[%s442 + $0x50] sm:$0xff]
        %v495 = vld [vmem:[%s442 + $0x58] sm:$0xff]
        %v496 = vld [vmem:[%s442 + $0x60] sm:$0xff]
        %v497 = vld [vmem:[%s442 + $0x68] sm:$0xff]
        %v498 = vld [vmem:[%s442 + $0x70] sm:$0xff]
        %v499 = vld [vmem:[%s442 + $0x78] sm:$0xff]
        %v500 = vmul.f32 %v468, %v484
        %v501 = vmul.f32 %v469, %v485
        %v502 = vmul.f32 %v470, %v486
        %v503 = vmul.f32 %v471, %v487
        %v504 = vmul.f32 %v472, %v488
        %v505 = vmul.f32 %v473, %v489
        %v506 = vmul.f32 %v474, %v490
        %v507 = vmul.f32 %v475, %v491
        %v508 = vmul.f32 %v476, %v492
        %v509 = vmul.f32 %v477, %v493
        %v510 = vmul.f32 %v478, %v494
        %v511 = vmul.f32 %v479, %v495
        %v512 = vmul.f32 %v480, %v496
        %v513 = vmul.f32 %v481, %v497
        %v514 = vmul.f32 %v482, %v498
        %v515 = vmul.f32 %v483, %v499
        %v516 = vpack.c.bf16 %v501, %v500
        %v517 = vpack.c.bf16 %v503, %v502
        %v518 = vpack.c.bf16 %v505, %v504
        %v519 = vpack.c.bf16 %v507, %v506
        %v520 = vpack.c.bf16 %v509, %v508
        %v521 = vpack.c.bf16 %v511, %v510
        %v522 = vpack.c.bf16 %v513, %v512
        %v523 = vpack.c.bf16 %v515, %v514
        %v524 = vld [vmem:[%s456] sm:$0xff]
        %v525 = vld [vmem:[%s456 + $0x8] sm:$0xff]
        %v526 = vld [vmem:[%s456 + $0x10] sm:$0xff]
        %v527 = vld [vmem:[%s456 + $0x18] sm:$0xff]
        %v528 = vld [vmem:[%s456 + $0x20] sm:$0xff]
        %v529 = vld [vmem:[%s456 + $0x28] sm:$0xff]
        %v530 = vld [vmem:[%s456 + $0x30] sm:$0xff]
        %v531 = vld [vmem:[%s456 + $0x38] sm:$0xff]
        %v532 = vld [vmem:[%s456 + $0x40] sm:$0xff]
        %v533 = vld [vmem:[%s456 + $0x48] sm:$0xff]
        %v534 = vld [vmem:[%s456 + $0x50] sm:$0xff]
        %v535 = vld [vmem:[%s456 + $0x58] sm:$0xff]
        %v536 = vld [vmem:[%s456 + $0x60] sm:$0xff]
        %v537 = vld [vmem:[%s456 + $0x68] sm:$0xff]
        %v538 = vld [vmem:[%s456 + $0x70] sm:$0xff]
        %v539 = vld [vmem:[%s456 + $0x78] sm:$0xff]
        %v540 = vpack.c.bf16 %v525, %v524
        %v541 = vpack.c.bf16 %v527, %v526
        %v542 = vpack.c.bf16 %v529, %v528
        %v543 = vpack.c.bf16 %v531, %v530
        %v544 = vpack.c.bf16 %v533, %v532
        %v545 = vpack.c.bf16 %v535, %v534
        %v546 = vpack.c.bf16 %v537, %v536
        %v547 = vpack.c.bf16 %v539, %v538
        %v548 = vld [vmem:[%s3] sm:$0xf]
        %v549 = vld [vmem:[%s3 + $0x4] sm:$0xf]
        %v550 = vld [vmem:[%s3 + $0x8] sm:$0xf]
        %v551 = vld [vmem:[%s3 + $0xc] sm:$0xf]
        %v552 = vld [vmem:[%s4] sm:$0xf]
        %v553 = vld [vmem:[%s4 + $0x4] sm:$0xf]
        %v554 = vld [vmem:[%s4 + $0x8] sm:$0xf]
        %v555 = vld [vmem:[%s4 + $0xc] sm:$0xf]
        %v560 = vunpack.c.l.b16 %v552
        %v561 = vunpack.c.l.b16 %v553
        %v562 = vunpack.c.l.b16 %v554
        %v563 = vunpack.c.l.b16 %v555
        %v564 = vpack.c.b16 %v561, %v560
        %v565 = vpack.c.b16 %v563, %v562
        %vm568 = vcmask 261120
        %v570 = vsel %vm568, %v540, 0
        %v573 = vsel %vm568, %v541, 0
        %v576 = vsel %vm568, %v542, 0
        %v579 = vsel %vm568, %v543, 0
        %v582 = vsel %vm568, %v544, 0
        %v585 = vsel %vm568, %v545, 0
        %v588 = vsel %vm568, %v546, 0
        %v591 = vsel %vm568, %v547, 0
        %593 = vmatprep.subr.bf16.mxu0 0
        %594 = vmatpush1.bf16.msra.mxu0 %v564
        %595 = vmatprep.subr.bf16.mxu0 0
        %596 = vmatpush1.bf16.msra.mxu0 %v565
        %597 = vmatprep.subr.bf16.mxu0 0
        %598 = vmatpush1.bf16.msra.mxu0 0
        %599 = vmatprep.subr.bf16.mxu0 0
        %600 = vmatpush1.bf16.msra.mxu0 0
        %601 = vmatprep.subr.bf16.mxu0 0
        %602 = vmatpush1.bf16.msra.mxu0 0
        %603 = vmatprep.subr.bf16.mxu0 0
        %604 = vmatpush1.bf16.msra.mxu0 0
        %605 = vmatprep.subr.bf16.mxu0 0
        %606 = vmatpush1.bf16.msra.mxu0 0
        %607 = vmatprep.subr.bf16.mxu0 0
        %608 = vmatpush1.bf16.msra.mxu0 0
        %609 = vmatprep.subr.bf16.mxu0 0
        %610 = vmatpush1.bf16.msra.mxu0 0
        %611 = vmatprep.subr.bf16.mxu0 0
        %612 = vmatpush1.bf16.msra.mxu0 0
        %613 = vmatprep.subr.bf16.mxu0 0
        %614 = vmatpush1.bf16.msra.mxu0 0
        %615 = vmatprep.subr.bf16.mxu0 0
        %616 = vmatpush1.bf16.msra.mxu0 0
        %617 = vmatprep.subr.bf16.mxu0 0
        %618 = vmatpush1.bf16.msra.mxu0 0
        %619 = vmatprep.subr.bf16.mxu0 0
        %620 = vmatpush1.bf16.msra.mxu0 0
        %621 = vmatprep.subr.bf16.mxu0 0
        %622 = vmatpush1.bf16.msra.mxu0 0
        %623 = vmatprep.subr.bf16.mxu0 0
        %624 = vmatpush1.bf16.msra.mxu0 0
        %625 = vmatprep.mubr.bf16.mxu0 0
        %626 = vmatmul.mubr.bf16.gmra.mrb[0].mxu0 %v570
        %v627 = vpop.f32.mrb[0].mxu0
        %v628 = vadd.f32 0.0, %v627
        %v629 = vpop.f32.mrb[0].mxu0
        %v630 = vpop.f32.mrb[0].mxu0
        %v631 = vadd.f32 0.0, %v630
        %v632 = vpop.f32.mrb[0].mxu0
        %633 = vmatprep.mubr.bf16.mxu0 0
        %634 = vmatmul.mubr.bf16.gmra.mrb[0].mxu0 %v573
        %v635 = vpop.f32.mrb[0].mxu0
        %v636 = vadd.f32 0.0, %v635
        %v637 = vpop.f32.mrb[0].mxu0
        %v638 = vpop.f32.mrb[0].mxu0
        %v639 = vadd.f32 0.0, %v638
        %v640 = vpop.f32.mrb[0].mxu0
        %641 = vmatprep.mubr.bf16.mxu0 0
        %642 = vmatmul.mubr.bf16.gmra.mrb[0].mxu0 %v576
        %v643 = vpop.f32.mrb[0].mxu0
        %v644 = vadd.f32 0.0, %v643
        %v645 = vpop.f32.mrb[0].mxu0
        %v646 = vpop.f32.mrb[0].mxu0
        %v647 = vadd.f32 0.0, %v646
        %v648 = vpop.f32.mrb[0].mxu0
        %649 = vmatprep.mubr.bf16.mxu0 0
        %650 = vmatmul.mubr.bf16.gmra.mrb[0].mxu0 %v579
        %v651 = vpop.f32.mrb[0].mxu0
        %v652 = vadd.f32 0.0, %v651
        %v653 = vpop.f32.mrb[0].mxu0
        %v654 = vpop.f32.mrb[0].mxu0
        %v655 = vadd.f32 0.0, %v654
        %v656 = vpop.f32.mrb[0].mxu0
        %657 = vmatprep.mubr.bf16.mxu0 0
        %658 = vmatmul.mubr.bf16.gmra.mrb[0].mxu0 %v582
        %v659 = vpop.f32.mrb[0].mxu0
        %v660 = vadd.f32 0.0, %v659
        %v661 = vpop.f32.mrb[0].mxu0
        %v662 = vpop.f32.mrb[0].mxu0
        %v663 = vadd.f32 0.0, %v662
        %v664 = vpop.f32.mrb[0].mxu0
        %665 = vmatprep.mubr.bf16.mxu0 0
        %666 = vmatmul.mubr.bf16.gmra.mrb[0].mxu0 %v585
        %v667 = vpop.f32.mrb[0].mxu0
        %v668 = vadd.f32 0.0, %v667
        %v669 = vpop.f32.mrb[0].mxu0
        %v670 = vpop.f32.mrb[0].mxu0
        %v671 = vadd.f32 0.0, %v670
        %v672 = vpop.f32.mrb[0].mxu0
        %673 = vmatprep.mubr.bf16.mxu0 0
        %674 = vmatmul.mubr.bf16.gmra.mrb[0].mxu0 %v588
        %v675 = vpop.f32.mrb[0].mxu0
        %v676 = vadd.f32 0.0, %v675
        %v677 = vpop.f32.mrb[0].mxu0
        %v678 = vpop.f32.mrb[0].mxu0
        %v679 = vadd.f32 0.0, %v678
        %v680 = vpop.f32.mrb[0].mxu0
        %681 = vmatprep.mubr.bf16.mxu0 0
        %682 = vmatmul.mubr.bf16.gmra.mrb[0].mxu0 %v591
        %v683 = vpop.f32.mrb[0].mxu0
        %v684 = vadd.f32 0.0, %v683
        %v685 = vpop.f32.mrb[0].mxu0
        %v686 = vpop.f32.mrb[0].mxu0
        %v687 = vadd.f32 0.0, %v686
        %v688 = vpop.f32.mrb[0].mxu0
        %689 = vdwg.mxu0
        %v694 = vunpack.c.l.b16 %v548
        %v695 = vunpack.c.l.b16 %v549
        %v696 = vunpack.c.l.b16 %v550
        %v697 = vunpack.c.l.b16 %v551
        %v698 = vpack.c.b16 %v695, %v694
        %v699 = vpack.c.b16 %v697, %v696
        %v703 = vsel %vm568, %v516, 0
        %v706 = vsel %vm568, %v517, 0
        %v709 = vsel %vm568, %v518, 0
        %v712 = vsel %vm568, %v519, 0
        %v715 = vsel %vm568, %v520, 0
        %v718 = vsel %vm568, %v521, 0
        %v721 = vsel %vm568, %v522, 0
        %v724 = vsel %vm568, %v523, 0
        %726 = vmatprep.subr.bf16.mxu0 0
        %727 = vmatpush1.bf16.msra.mxu0 %v698
        %728 = vmatprep.subr.bf16.mxu0 0
        %729 = vmatpush1.bf16.msra.mxu0 %v699
        %730 = vmatprep.subr.bf16.mxu0 0
        %731 = vmatpush1.bf16.msra.mxu0 0
        %732 = vmatprep.subr.bf16.mxu0 0
        %733 = vmatpush1.bf16.msra.mxu0 0
        %734 = vmatprep.subr.bf16.mxu0 0
        %735 = vmatpush1.bf16.msra.mxu0 0
        %736 = vmatprep.subr.bf16.mxu0 0
        %737 = vmatpush1.bf16.msra.mxu0 0
        %738 = vmatprep.subr.bf16.mxu0 0
        %739 = vmatpush1.bf16.msra.mxu0 0
        %740 = vmatprep.subr.bf16.mxu0 0
        %741 = vmatpush1.bf16.msra.mxu0 0
        %742 = vmatprep.subr.bf16.mxu0 0
        %743 = vmatpush1.bf16.msra.mxu0 0
        %744 = vmatprep.subr.bf16.mxu0 0
        %745 = vmatpush1.bf16.msra.mxu0 0
        %746 = vmatprep.subr.bf16.mxu0 0
        %747 = vmatpush1.bf16.msra.mxu0 0
        %748 = vmatprep.subr.bf16.mxu0 0
        %749 = vmatpush1.bf16.msra.mxu0 0
        %750 = vmatprep.subr.bf16.mxu0 0
        %751 = vmatpush1.bf16.msra.mxu0 0
        %752 = vmatprep.subr.bf16.mxu0 0
        %753 = vmatpush1.bf16.msra.mxu0 0
        %754 = vmatprep.subr.bf16.mxu0 0
        %755 = vmatpush1.bf16.msra.mxu0 0
        %756 = vmatprep.subr.bf16.mxu0 0
        %757 = vmatpush1.bf16.msra.mxu0 0
        %758 = vmatprep.mubr.bf16.mxu0 0
        %759 = vmatmul.mubr.bf16.gmra.mrb[0].mxu0 %v703
        %v760 = vpop.f32.mrb[0].mxu0
        %v761 = vadd.f32 %v628, %v760
        %v762 = vpop.f32.mrb[0].mxu0
        %v763 = vpop.f32.mrb[0].mxu0
        %v764 = vadd.f32 %v631, %v763
        %v765 = vpop.f32.mrb[0].mxu0
        %766 = vmatprep.mubr.bf16.mxu0 0
        %767 = vmatmul.mubr.bf16.gmra.mrb[0].mxu0 %v706
        %v768 = vpop.f32.mrb[0].mxu0
        %v769 = vadd.f32 %v636, %v768
        %v770 = vpop.f32.mrb[0].mxu0
        %v771 = vpop.f32.mrb[0].mxu0
        %v772 = vadd.f32 %v639, %v771
        %v773 = vpop.f32.mrb[0].mxu0
        %774 = vmatprep.mubr.bf16.mxu0 0
        %775 = vmatmul.mubr.bf16.gmra.mrb[0].mxu0 %v709
        %v776 = vpop.f32.mrb[0].mxu0
        %v777 = vadd.f32 %v644, %v776
        %v778 = vpop.f32.mrb[0].mxu0
        %v779 = vpop.f32.mrb[0].mxu0
        %v780 = vadd.f32 %v647, %v779
        %v781 = vpop.f32.mrb[0].mxu0
        %782 = vmatprep.mubr.bf16.mxu0 0
        %783 = vmatmul.mubr.bf16.gmra.mrb[0].mxu0 %v712
        %v784 = vpop.f32.mrb[0].mxu0
        %v785 = vadd.f32 %v652, %v784
        %v786 = vpop.f32.mrb[0].mxu0
        %v787 = vpop.f32.mrb[0].mxu0
        %v788 = vadd.f32 %v655, %v787
        %v789 = vpop.f32.mrb[0].mxu0
        %790 = vmatprep.mubr.bf16.mxu0 0
        %791 = vmatmul.mubr.bf16.gmra.mrb[0].mxu0 %v715
        %v792 = vpop.f32.mrb[0].mxu0
        %v793 = vadd.f32 %v660, %v792
        %v794 = vpop.f32.mrb[0].mxu0
        %v795 = vpop.f32.mrb[0].mxu0
        %v796 = vadd.f32 %v663, %v795
        %v797 = vpop.f32.mrb[0].mxu0
        %798 = vmatprep.mubr.bf16.mxu0 0
        %799 = vmatmul.mubr.bf16.gmra.mrb[0].mxu0 %v718
        %v800 = vpop.f32.mrb[0].mxu0
        %v801 = vadd.f32 %v668, %v800
        %v802 = vpop.f32.mrb[0].mxu0
        %v803 = vpop.f32.mrb[0].mxu0
        %v804 = vadd.f32 %v671, %v803
        %v805 = vpop.f32.mrb[0].mxu0
        %806 = vmatprep.mubr.bf16.mxu0 0
        %807 = vmatmul.mubr.bf16.gmra.mrb[0].mxu0 %v721
        %v808 = vpop.f32.mrb[0].mxu0
        %v809 = vadd.f32 %v676, %v808
        %v810 = vpop.f32.mrb[0].mxu0
        %v811 = vpop.f32.mrb[0].mxu0
        %v812 = vadd.f32 %v679, %v811
        %v813 = vpop.f32.mrb[0].mxu0
        %814 = vmatprep.mubr.bf16.mxu0 0
        %815 = vmatmul.mubr.bf16.gmra.mrb[0].mxu0 %v724
        %v816 = vpop.f32.mrb[0].mxu0
        %v817 = vadd.f32 %v684, %v816
        %v818 = vpop.f32.mrb[0].mxu0
        %v819 = vpop.f32.mrb[0].mxu0
        %v820 = vadd.f32 %v687, %v819
        %v821 = vpop.f32.mrb[0].mxu0
        %822 = vdwg.mxu0
        %v823 = vld [vmem:[%s5] sm:$0x1]
        %v825 = vlaneseq
        %v826 = vshrl.u32 %v825, 7
        %v827 = vsub.s32 0, %v826
        %v828 = vrot.slane %v823, %v827
        %v830 = vadd.f32 %v761, %v828
        %v831 = vadd.f32 %v764, %v828
        %v832 = vadd.f32 %v769, %v828
        %v833 = vadd.f32 %v772, %v828
        %v834 = vadd.f32 %v777, %v828
        %v835 = vadd.f32 %v780, %v828
        %v836 = vadd.f32 %v785, %v828
        %v837 = vadd.f32 %v788, %v828
        %v838 = vadd.f32 %v793, %v828
        %v839 = vadd.f32 %v796, %v828
        %v840 = vadd.f32 %v801, %v828
        %v841 = vadd.f32 %v804, %v828
        %v842 = vadd.f32 %v809, %v828
        %v843 = vadd.f32 %v812, %v828
        %v844 = vadd.f32 %v817, %v828
        %v845 = vadd.f32 %v820, %v828
        %v846 = vmax.f32 %v830, 0.0
        %v847 = vmax.f32 %v831, 0.0
        %v848 = vmax.f32 %v832, 0.0
        %v849 = vmax.f32 %v833, 0.0
        %v850 = vmax.f32 %v834, 0.0
        %v851 = vmax.f32 %v835, 0.0
        %v852 = vmax.f32 %v836, 0.0
        %v853 = vmax.f32 %v837, 0.0
        %v854 = vmax.f32 %v838, 0.0
        %v855 = vmax.f32 %v839, 0.0
        %v856 = vmax.f32 %v840, 0.0
        %v857 = vmax.f32 %v841, 0.0
        %v858 = vmax.f32 %v842, 0.0
        %v859 = vmax.f32 %v843, 0.0
        %v860 = vmax.f32 %v844, 0.0
        %v861 = vmax.f32 %v845, 0.0
        %v862 = vpack.c.bf16 %v847, %v846
        %v863 = vpack.c.bf16 %v849, %v848
        %v864 = vpack.c.bf16 %v851, %v850
        %v865 = vpack.c.bf16 %v853, %v852
        %v866 = vpack.c.bf16 %v855, %v854
        %v867 = vpack.c.bf16 %v857, %v856
        %v868 = vpack.c.bf16 %v859, %v858
        %v869 = vpack.c.bf16 %v861, %v860
        %v870 = vld [vmem:[%s6] sm:$0xf]
        %v871 = vld [vmem:[%s6 + $0x4] sm:$0xf]
        %v872 = vld [vmem:[%s6 + $0x8] sm:$0xf]
        %v873 = vld [vmem:[%s6 + $0xc] sm:$0xf]
        %v874 = vld [vmem:[%s7] sm:$0x1]
        %v876 = vlaneseq
        %v877 = vshrl.u32 %v876, 7
        %v878 = vsub.s32 0, %v877
        %v879 = vrot.slane %v874, %v878
        %v885 = vunpack.c.l.b16 %v870
        %v886 = vunpack.c.l.b16 %v871
        %v887 = vunpack.c.l.b16 %v872
        %v888 = vunpack.c.l.b16 %v873
        %v889 = vpack.c.b16 %v886, %v885
        %v890 = vpack.c.b16 %v888, %v887
        %v894 = vsel %vm568, %v862, 0
        %v897 = vsel %vm568, %v863, 0
        %v900 = vsel %vm568, %v864, 0
        %v903 = vsel %vm568, %v865, 0
        %v906 = vsel %vm568, %v866, 0
        %v909 = vsel %vm568, %v867, 0
        %v912 = vsel %vm568, %v868, 0
        %v915 = vsel %vm568, %v869, 0
        %917 = vmatprep.subr.bf16.mxu0 0
        %918 = vmatpush1.bf16.msra.mxu0 %v889
        %919 = vmatprep.subr.bf16.mxu0 0
        %920 = vmatpush1.bf16.msra.mxu0 %v890
        %921 = vmatprep.subr.bf16.mxu0 0
        %922 = vmatpush1.bf16.msra.mxu0 0
        %923 = vmatprep.subr.bf16.mxu0 0
        %924 = vmatpush1.bf16.msra.mxu0 0
        %925 = vmatprep.subr.bf16.mxu0 0
        %926 = vmatpush1.bf16.msra.mxu0 0
        %927 = vmatprep.subr.bf16.mxu0 0
        %928 = vmatpush1.bf16.msra.mxu0 0
        %929 = vmatprep.subr.bf16.mxu0 0
        %930 = vmatpush1.bf16.msra.mxu0 0
        %931 = vmatprep.subr.bf16.mxu0 0
        %932 = vmatpush1.bf16.msra.mxu0 0
        %933 = vmatprep.subr.bf16.mxu0 0
        %934 = vmatpush1.bf16.msra.mxu0 0
        %935 = vmatprep.subr.bf16.mxu0 0
        %936 = vmatpush1.bf16.msra.mxu0 0
        %937 = vmatprep.subr.bf16.mxu0 0
        %938 = vmatpush1.bf16.msra.mxu0 0
        %939 = vmatprep.subr.bf16.mxu0 0
        %940 = vmatpush1.bf16.msra.mxu0 0
        %941 = vmatprep.subr.bf16.mxu0 0
        %942 = vmatpush1.bf16.msra.mxu0 0
        %943 = vmatprep.subr.bf16.mxu0 0
        %944 = vmatpush1.bf16.msra.mxu0 0
        %945 = vmatprep.subr.bf16.mxu0 0
        %946 = vmatpush1.bf16.msra.mxu0 0
        %947 = vmatprep.subr.bf16.mxu0 0
        %948 = vmatpush1.bf16.msra.mxu0 0
        %949 = vmatprep.mubr.bf16.mxu0 0
        %950 = vmatmul.mubr.bf16.gmra.mrb[0].mxu0 %v894
        %v951 = vpop.f32.mrb[0].mxu0
        %v952 = vadd.f32 %v879, %v951
        %v953 = vpop.f32.mrb[0].mxu0
        %v954 = vpop.f32.mrb[0].mxu0
        %v955 = vadd.f32 %v879, %v954
        %v956 = vpop.f32.mrb[0].mxu0
        %957 = vmatprep.mubr.bf16.mxu0 0
        %958 = vmatmul.mubr.bf16.gmra.mrb[0].mxu0 %v897
        %v959 = vpop.f32.mrb[0].mxu0
        %v960 = vadd.f32 %v879, %v959
        %v961 = vpop.f32.mrb[0].mxu0
        %v962 = vpop.f32.mrb[0].mxu0
        %v963 = vadd.f32 %v879, %v962
        %v964 = vpop.f32.mrb[0].mxu0
        %965 = vmatprep.mubr.bf16.mxu0 0
        %966 = vmatmul.mubr.bf16.gmra.mrb[0].mxu0 %v900
        %v967 = vpop.f32.mrb[0].mxu0
        %v968 = vadd.f32 %v879, %v967
        %v969 = vpop.f32.mrb[0].mxu0
        %v970 = vpop.f32.mrb[0].mxu0
        %v971 = vadd.f32 %v879, %v970
        %v972 = vpop.f32.mrb[0].mxu0
        %973 = vmatprep.mubr.bf16.mxu0 0
        %974 = vmatmul.mubr.bf16.gmra.mrb[0].mxu0 %v903
        %v975 = vpop.f32.mrb[0].mxu0
        %v976 = vadd.f32 %v879, %v975
        %v977 = vpop.f32.mrb[0].mxu0
        %v978 = vpop.f32.mrb[0].mxu0
        %v979 = vadd.f32 %v879, %v978
        %v980 = vpop.f32.mrb[0].mxu0
        %981 = vmatprep.mubr.bf16.mxu0 0
        %982 = vmatmul.mubr.bf16.gmra.mrb[0].mxu0 %v906
        %v983 = vpop.f32.mrb[0].mxu0
        %v984 = vadd.f32 %v879, %v983
        %v985 = vpop.f32.mrb[0].mxu0
        %v986 = vpop.f32.mrb[0].mxu0
        %v987 = vadd.f32 %v879, %v986
        %v988 = vpop.f32.mrb[0].mxu0
        %989 = vmatprep.mubr.bf16.mxu0 0
        %990 = vmatmul.mubr.bf16.gmra.mrb[0].mxu0 %v909
        %v991 = vpop.f32.mrb[0].mxu0
        %v992 = vadd.f32 %v879, %v991
        %v993 = vpop.f32.mrb[0].mxu0
        %v994 = vpop.f32.mrb[0].mxu0
        %v995 = vadd.f32 %v879, %v994
        %v996 = vpop.f32.mrb[0].mxu0
        %997 = vmatprep.mubr.bf16.mxu0 0
        %998 = vmatmul.mubr.bf16.gmra.mrb[0].mxu0 %v912
        %v999 = vpop.f32.mrb[0].mxu0
        %v1000 = vadd.f32 %v879, %v999
        %v1001 = vpop.f32.mrb[0].mxu0
        %v1002 = vpop.f32.mrb[0].mxu0
        %v1003 = vadd.f32 %v879, %v1002
        %v1004 = vpop.f32.mrb[0].mxu0
        %1005 = vmatprep.mubr.bf16.mxu0 0
        %1006 = vmatmul.mubr.bf16.gmra.mrb[0].mxu0 %v915
        %v1007 = vpop.f32.mrb[0].mxu0
        %v1008 = vadd.f32 %v879, %v1007
        %v1009 = vpop.f32.mrb[0].mxu0
        %v1010 = vpop.f32.mrb[0].mxu0
        %v1011 = vadd.f32 %v879, %v1010
        %v1012 = vpop.f32.mrb[0].mxu0
        %1013 = vdwg.mxu0
        %v1014 = vmax.f32 %v952, 0.0
        %v1015 = vmax.f32 %v955, 0.0
        %v1016 = vmax.f32 %v960, 0.0
        %v1017 = vmax.f32 %v963, 0.0
        %v1018 = vmax.f32 %v968, 0.0
        %v1019 = vmax.f32 %v971, 0.0
        %v1020 = vmax.f32 %v976, 0.0
        %v1021 = vmax.f32 %v979, 0.0
        %v1022 = vmax.f32 %v984, 0.0
        %v1023 = vmax.f32 %v987, 0.0
        %v1024 = vmax.f32 %v992, 0.0
        %v1025 = vmax.f32 %v995, 0.0
        %v1026 = vmax.f32 %v1000, 0.0
        %v1027 = vmax.f32 %v1003, 0.0
        %v1028 = vmax.f32 %v1008, 0.0
        %v1029 = vmax.f32 %v1011, 0.0
        %v1030 = vld [vmem:[%s8] sm:$0x1]
        %v1032 = vlaneseq
        %v1033 = vshrl.u32 %v1032, 7
        %v1034 = vsub.s32 0, %v1033
        %v1035 = vrot.slane %v1030, %v1034
        %v1037 = vmul.f32 %v1014, %v1035
        %v1038 = vmul.f32 %v1015, %v1035
        %v1039 = vmul.f32 %v1016, %v1035
        %v1040 = vmul.f32 %v1017, %v1035
        %v1041 = vmul.f32 %v1018, %v1035
        %v1042 = vmul.f32 %v1019, %v1035
        %v1043 = vmul.f32 %v1020, %v1035
        %v1044 = vmul.f32 %v1021, %v1035
        %v1045 = vmul.f32 %v1022, %v1035
        %v1046 = vmul.f32 %v1023, %v1035
        %v1047 = vmul.f32 %v1024, %v1035
        %v1048 = vmul.f32 %v1025, %v1035
        %v1049 = vmul.f32 %v1026, %v1035
        %v1050 = vmul.f32 %v1027, %v1035
        %v1051 = vmul.f32 %v1028, %v1035
        %v1052 = vmul.f32 %v1029, %v1035
        %v1053 = vsel %vm568, %v1037, 0.0
        %1054 = vadd.xlane.f32.xlu0 %v1053
        %v1055 = vpop.xlane.xlu0 %1054
        %v1056 = vsel %vm568, %v1038, 0.0
        %1057 = vadd.xlane.f32.xlu0 %v1056
        %v1058 = vpop.xlane.xlu0 %1057
        %v1059 = vsel %vm568, %v1039, 0.0
        %1060 = vadd.xlane.f32.xlu0 %v1059
        %v1061 = vpop.xlane.xlu0 %1060
        %v1062 = vsel %vm568, %v1040, 0.0
        %1063 = vadd.xlane.f32.xlu0 %v1062
        %v1064 = vpop.xlane.xlu0 %1063
        %v1065 = vsel %vm568, %v1041, 0.0
        %1066 = vadd.xlane.f32.xlu0 %v1065
        %v1067 = vpop.xlane.xlu0 %1066
        %v1068 = vsel %vm568, %v1042, 0.0
        %1069 = vadd.xlane.f32.xlu0 %v1068
        %v1070 = vpop.xlane.xlu0 %1069
        %v1071 = vsel %vm568, %v1043, 0.0
        %1072 = vadd.xlane.f32.xlu0 %v1071
        %v1073 = vpop.xlane.xlu0 %1072
        %v1074 = vsel %vm568, %v1044, 0.0
        %1075 = vadd.xlane.f32.xlu0 %v1074
        %v1076 = vpop.xlane.xlu0 %1075
        %v1077 = vsel %vm568, %v1045, 0.0
        %1078 = vadd.xlane.f32.xlu0 %v1077
        %v1079 = vpop.xlane.xlu0 %1078
        %v1080 = vsel %vm568, %v1046, 0.0
        %1081 = vadd.xlane.f32.xlu0 %v1080
        %v1082 = vpop.xlane.xlu0 %1081
        %v1083 = vsel %vm568, %v1047, 0.0
        %1084 = vadd.xlane.f32.xlu0 %v1083
        %v1085 = vpop.xlane.xlu0 %1084
        %v1086 = vsel %vm568, %v1048, 0.0
        %1087 = vadd.xlane.f32.xlu0 %v1086
        %v1088 = vpop.xlane.xlu0 %1087
        %v1089 = vsel %vm568, %v1049, 0.0
        %1090 = vadd.xlane.f32.xlu0 %v1089
        %v1091 = vpop.xlane.xlu0 %1090
        %v1092 = vsel %vm568, %v1050, 0.0
        %1093 = vadd.xlane.f32.xlu0 %v1092
        %v1094 = vpop.xlane.xlu0 %1093
        %v1095 = vsel %vm568, %v1051, 0.0
        %1096 = vadd.xlane.f32.xlu0 %v1095
        %v1097 = vpop.xlane.xlu0 %1096
        %v1098 = vsel %vm568, %v1052, 0.0
        %1099 = vadd.xlane.f32.xlu0 %v1098
        %v1100 = vpop.xlane.xlu0 %1099
        %v1101 = vld [vmem:[#allocation2] sm:$0x1]
        %v1103 = vlaneseq
        %v1104 = vshrl.u32 %v1103, 7
        %v1105 = vsub.s32 0, %v1104
        %v1106 = vrot.slane %v1101, %v1105
        %v1108 = vadd.f32 %v1055, %v1106
        %v1109 = vadd.f32 %v1058, %v1106
        %v1110 = vadd.f32 %v1061, %v1106
        %v1111 = vadd.f32 %v1064, %v1106
        %v1112 = vadd.f32 %v1067, %v1106
        %v1113 = vadd.f32 %v1070, %v1106
        %v1114 = vadd.f32 %v1073, %v1106
        %v1115 = vadd.f32 %v1076, %v1106
        %v1116 = vadd.f32 %v1079, %v1106
        %v1117 = vadd.f32 %v1082, %v1106
        %v1118 = vadd.f32 %v1085, %v1106
        %v1119 = vadd.f32 %v1088, %v1106
        %v1120 = vadd.f32 %v1091, %v1106
        %v1121 = vadd.f32 %v1094, %v1106
        %v1122 = vadd.f32 %v1097, %v1106
        %v1123 = vadd.f32 %v1100, %v1106
        %v1124 = vxor.u32 %v1108, 2147483648
        %v1125 = vxor.u32 %v1109, 2147483648
        %v1126 = vxor.u32 %v1110, 2147483648
        %v1127 = vxor.u32 %v1111, 2147483648
        %v1128 = vxor.u32 %v1112, 2147483648
        %v1129 = vxor.u32 %v1113, 2147483648
        %v1130 = vxor.u32 %v1114, 2147483648
        %v1131 = vxor.u32 %v1115, 2147483648
        %v1132 = vxor.u32 %v1116, 2147483648
        %v1133 = vxor.u32 %v1117, 2147483648
        %v1134 = vxor.u32 %v1118, 2147483648
        %v1135 = vxor.u32 %v1119, 2147483648
        %v1136 = vxor.u32 %v1120, 2147483648
        %v1137 = vxor.u32 %v1121, 2147483648
        %v1138 = vxor.u32 %v1122, 2147483648
        %v1139 = vxor.u32 %v1123, 2147483648
        %v1140 = vmul.f32 %v1124, 1.442695
        %v1141 = vpow.pop %v1140
        %v1142 = vmul.f32 %v1125, 1.442695
        %v1143 = vpow.pop %v1142
        %v1144 = vmul.f32 %v1126, 1.442695
        %v1145 = vpow.pop %v1144
        %v1146 = vmul.f32 %v1127, 1.442695
        %v1147 = vpow.pop %v1146
        %v1148 = vmul.f32 %v1128, 1.442695
        %v1149 = vpow.pop %v1148
        %v1150 = vmul.f32 %v1129, 1.442695
        %v1151 = vpow.pop %v1150
        %v1152 = vmul.f32 %v1130, 1.442695
        %v1153 = vpow.pop %v1152
        %v1154 = vmul.f32 %v1131, 1.442695
        %v1155 = vpow.pop %v1154
        %v1156 = vmul.f32 %v1132, 1.442695
        %v1157 = vpow.pop %v1156
        %v1158 = vmul.f32 %v1133, 1.442695
        %v1159 = vpow.pop %v1158
        %v1160 = vmul.f32 %v1134, 1.442695
        %v1161 = vpow.pop %v1160
        %v1162 = vmul.f32 %v1135, 1.442695
        %v1163 = vpow.pop %v1162
        %v1164 = vmul.f32 %v1136, 1.442695
        %v1165 = vpow.pop %v1164
        %v1166 = vmul.f32 %v1137, 1.442695
        %v1167 = vpow.pop %v1166
        %v1168 = vmul.f32 %v1138, 1.442695
        %v1169 = vpow.pop %v1168
        %v1170 = vmul.f32 %v1139, 1.442695
        %v1171 = vpow.pop %v1170
        %v1172 = vadd.f32 %v1141, 1.0
        %v1173 = vadd.f32 %v1143, 1.0
        %v1174 = vadd.f32 %v1145, 1.0
        %v1175 = vadd.f32 %v1147, 1.0
        %v1176 = vadd.f32 %v1149, 1.0
        %v1177 = vadd.f32 %v1151, 1.0
        %v1178 = vadd.f32 %v1153, 1.0
        %v1179 = vadd.f32 %v1155, 1.0
        %v1180 = vadd.f32 %v1157, 1.0
        %v1181 = vadd.f32 %v1159, 1.0
        %v1182 = vadd.f32 %v1161, 1.0
        %v1183 = vadd.f32 %v1163, 1.0
        %v1184 = vadd.f32 %v1165, 1.0
        %v1185 = vadd.f32 %v1167, 1.0
        %v1186 = vadd.f32 %v1169, 1.0
        %v1187 = vadd.f32 %v1171, 1.0
        %v1188 = vrcp.pop %v1172
        %v1189 = vmul.f32 1.0, %v1188
        %v1190 = vrcp.pop %v1173
        %v1191 = vmul.f32 1.0, %v1190
        %v1192 = vrcp.pop %v1174
        %v1193 = vmul.f32 1.0, %v1192
        %v1194 = vrcp.pop %v1175
        %v1195 = vmul.f32 1.0, %v1194
        %v1196 = vrcp.pop %v1176
        %v1197 = vmul.f32 1.0, %v1196
        %v1198 = vrcp.pop %v1177
        %v1199 = vmul.f32 1.0, %v1198
        %v1200 = vrcp.pop %v1178
        %v1201 = vmul.f32 1.0, %v1200
        %v1202 = vrcp.pop %v1179
        %v1203 = vmul.f32 1.0, %v1202
        %v1204 = vrcp.pop %v1180
        %v1205 = vmul.f32 1.0, %v1204
        %v1206 = vrcp.pop %v1181
        %v1207 = vmul.f32 1.0, %v1206
        %v1208 = vrcp.pop %v1182
        %v1209 = vmul.f32 1.0, %v1208
        %v1210 = vrcp.pop %v1183
        %v1211 = vmul.f32 1.0, %v1210
        %v1212 = vrcp.pop %v1184
        %v1213 = vmul.f32 1.0, %v1212
        %v1214 = vrcp.pop %v1185
        %v1215 = vmul.f32 1.0, %v1214
        %v1216 = vrcp.pop %v1186
        %v1217 = vmul.f32 1.0, %v1216
        %v1218 = vrcp.pop %v1187
        %v1219 = vmul.f32 1.0, %v1218
        %vm1220 = vcmask 7168
        %1221 = vst.msk [vmem:[%s419] sm:$0xff] %vm1220, %v1189
        %1222 = vst.msk [vmem:[%s419 + $0x8] sm:$0xff] %vm1220, %v1191
        %1223 = vst.msk [vmem:[%s419 + $0x10] sm:$0xff] %vm1220, %v1193
        %1224 = vst.msk [vmem:[%s419 + $0x18] sm:$0xff] %vm1220, %v1195
        %1225 = vst.msk [vmem:[%s419 + $0x20] sm:$0xff] %vm1220, %v1197
        %1226 = vst.msk [vmem:[%s419 + $0x28] sm:$0xff] %vm1220, %v1199
        %1227 = vst.msk [vmem:[%s419 + $0x30] sm:$0xff] %vm1220, %v1201
        %1228 = vst.msk [vmem:[%s419 + $0x38] sm:$0xff] %vm1220, %v1203
        %1229 = vst.msk [vmem:[%s419 + $0x40] sm:$0xff] %vm1220, %v1205
        %1230 = vst.msk [vmem:[%s419 + $0x48] sm:$0xff] %vm1220, %v1207
        %1231 = vst.msk [vmem:[%s419 + $0x50] sm:$0xff] %vm1220, %v1209
        %1232 = vst.msk [vmem:[%s419 + $0x58] sm:$0xff] %vm1220, %v1211
        %1233 = vst.msk [vmem:[%s419 + $0x60] sm:$0xff] %vm1220, %v1213
        %1234 = vst.msk [vmem:[%s419 + $0x68] sm:$0xff] %vm1220, %v1215
        %1235 = vst.msk [vmem:[%s419 + $0x70] sm:$0xff] %vm1220, %v1217
        %1236 = vst.msk [vmem:[%s419 + $0x78] sm:$0xff] %vm1220, %v1219
        %s1237 = sand.u32 %s256, 1
        %s1238 = sand.u32 %s256, 1
        %s1239 = smul.addr %s1238, 128
        %s1240 = scalar_lea.vmem [#allocation3], %s1239
        // Predicated region
        $region61: #{tpu_custom_call.1} parent=59 // pred_check
          %p1241 = pneg %p266
        $region62: #{tpu_custom_call.1} parent=59 // pred_check_branch
          %1243 = sbr.rel (%p1241) target = $region64
        $region63: #{tpu_custom_call.1} parent=59 // pred_region
          %s1244 = smul.u32 16, %s23
          %s1245 = ssub.s32 38, %s1244
          %p1246 = scmp.lt.s32.totalorder %s1245, 16
          %s1247 = scalar_select %p1246, %s1245, 16
          %s1248 = smul.u32 128, %s1247
          %p1249 = scmp.ne.s32.totalorder 0, %s1248
          %s1250 = smul.addr %s1244, 8
          %s1251 = scalar_lea.vmem %s10, %s1250
          // Predicated region
          $region65: #{tpu_custom_call.1} parent=63 // pred_check
            %p1252 = pneg %p1249
          $region66: #{tpu_custom_call.1} parent=63 // pred_check_branch
            %1254 = sbr.rel (%p1252) target = $region68
          $region67: #{tpu_custom_call.1} parent=63 // pred_region
            // Predicated region
            $region69: #{tpu_custom_call.1} parent=67 // pred_check
              _
            $region70: #{tpu_custom_call.1} parent=67 // pred_check_branch
              %1256 = sbr.rel (0) target = $region72
            $region71: #{tpu_custom_call.1} parent=67 // pred_region
              // Predicated region
              $region91: #{tpu_custom_call.1} parent=71 // pred_check
                _
              $region92: #{tpu_custom_call.1} parent=71 // pred_check_branch
                %1335 = sbr.rel (0) target = $region94
              $region93: #{tpu_custom_call.1} parent=71 // pred_region
                %s1336 = sshrl.u32 %s1247, 4
                // While loop
                $region95: #{tpu_custom_call.1} parent=93 // loop_pre_header
                  _
                $region96: #{tpu_custom_call.1} parent=93 // loop_header
                  %s1338 = sphi 0, %s1340
                  %p1339 = scmp.ge.s32.totalorder %s1338, %s1336
                  %s1343 = sphi 0, %s1380
                  %s1344 = sphi %s1240, %s1383
                  %s1345 = sphi %s1251, %s1384
                $region97: #{tpu_custom_call.1} parent=93 // loop_header_branch
                  %1342 = sbr.rel (%p1339) target = $region101
                $region98: #{tpu_custom_call.1} parent=93 // loop_body
                  %v1346 = vld [vmem:[%s1344] sm:$0xff]
                  %1347 = vst [vmem:[%s1345] sm:$0xff] %v1346
                  %v1348 = vld [vmem:[%s1344 + $0x8] sm:$0xff]
                  %1349 = vst [vmem:[%s1345 + $0x8] sm:$0xff] %v1348
                  %v1350 = vld [vmem:[%s1344 + $0x10] sm:$0xff]
                  %1351 = vst [vmem:[%s1345 + $0x10] sm:$0xff] %v1350
                  %v1352 = vld [vmem:[%s1344 + $0x18] sm:$0xff]
                  %1353 = vst [vmem:[%s1345 + $0x18] sm:$0xff] %v1352
                  %v1354 = vld [vmem:[%s1344 + $0x20] sm:$0xff]
                  %1355 = vst [vmem:[%s1345 + $0x20] sm:$0xff] %v1354
                  %v1356 = vld [vmem:[%s1344 + $0x28] sm:$0xff]
                  %1357 = vst [vmem:[%s1345 + $0x28] sm:$0xff] %v1356
                  %v1358 = vld [vmem:[%s1344 + $0x30] sm:$0xff]
                  %1359 = vst [vmem:[%s1345 + $0x30] sm:$0xff] %v1358
                  %v1360 = vld [vmem:[%s1344 + $0x38] sm:$0xff]
                  %1361 = vst [vmem:[%s1345 + $0x38] sm:$0xff] %v1360
                  %v1362 = vld [vmem:[%s1344 + $0x40] sm:$0xff]
                  %1363 = vst [vmem:[%s1345 + $0x40] sm:$0xff] %v1362
                  %v1364 = vld [vmem:[%s1344 + $0x48] sm:$0xff]
                  %1365 = vst [vmem:[%s1345 + $0x48] sm:$0xff] %v1364
                  %v1366 = vld [vmem:[%s1344 + $0x50] sm:$0xff]
                  %1367 = vst [vmem:[%s1345 + $0x50] sm:$0xff] %v1366
                  %v1368 = vld [vmem:[%s1344 + $0x58] sm:$0xff]
                  %1369 = vst [vmem:[%s1345 + $0x58] sm:$0xff] %v1368
                  %v1370 = vld [vmem:[%s1344 + $0x60] sm:$0xff]
                  %1371 = vst [vmem:[%s1345 + $0x60] sm:$0xff] %v1370
                  %v1372 = vld [vmem:[%s1344 + $0x68] sm:$0xff]
                  %1373 = vst [vmem:[%s1345 + $0x68] sm:$0xff] %v1372
                  %v1374 = vld [vmem:[%s1344 + $0x70] sm:$0xff]
                  %1375 = vst [vmem:[%s1345 + $0x70] sm:$0xff] %v1374
                  %v1376 = vld [vmem:[%s1344 + $0x78] sm:$0xff]
                  %1377 = vst [vmem:[%s1345 + $0x78] sm:$0xff] %v1376
                  %s1378 = sadd.s32 1, %s1343
                  %p1379 = scmp.ge.s32.totalorder %s1378, %s1336
                  %s1380 = scalar_select %p1379, 0, %s1378
                  %s1381 = smul.u32 %s1380, 128
                  %s1382 = smul.u32 %s1380, 128
                  %s1383 = scalar_lea.vmem %s1240, %s1381 [#allocation3]
                  %s1384 = scalar_lea.vmem %s1251, %s1382
                $region99: #{tpu_custom_call.1} parent=93 // loop_footer
                  %s1340 = sadd.s32 %s1338, 1
                $region100: #{tpu_custom_call.1} parent=93 // loop_footer_branch
                  %1337 = sbr.rel target = $region96
                $region101: #{tpu_custom_call.1} parent=93 // loop_exit
                  _
                %s1385 = sshrl.u32 %s1247, 4
                %s1386 = sand.u32 %s1247, 15
                %s1387 = smul.u32 %s1385, 16
                %s1388 = smul.u32 8, %s1387
                %s1389 = scalar_lea.vmem %s1240, %s1388 [#allocation3]
                %s1390 = smul.u32 8, %s1387
                %s1391 = scalar_lea.vmem %s1251, %s1390
                // While loop
                $region102: #{tpu_custom_call.1} parent=93 // loop_pre_header
                  _
                $region103: #{tpu_custom_call.1} parent=93 // loop_header
                  %s1393 = sphi 0, %s1395
                  %p1394 = scmp.ge.s32.totalorder %s1393, %s1386
                  %s1398 = sphi 0, %s1405
                  %s1399 = sphi %s1389, %s1408
                  %s1400 = sphi %s1391, %s1409
                $region104: #{tpu_custom_call.1} parent=93 // loop_header_branch
                  %1397 = sbr.rel (%p1394) target = $region108
                $region105: #{tpu_custom_call.1} parent=93 // loop_body
                  %v1401 = vld [vmem:[%s1399] sm:$0xff]
                  %1402 = vst [vmem:[%s1400] sm:$0xff] %v1401
                  %s1403 = sadd.s32 1, %s1398
                  %p1404 = scmp.ge.s32.totalorder %s1403, %s1386
                  %s1405 = scalar_select %p1404, 0, %s1403
                  %s1406 = smul.u32 %s1405, 8
                  %s1407 = smul.u32 %s1405, 8
                  %s1408 = scalar_lea.vmem %s1389, %s1406 [#allocation3]
                  %s1409 = scalar_lea.vmem %s1391, %s1407
                $region106: #{tpu_custom_call.1} parent=93 // loop_footer
                  %s1395 = sadd.s32 %s1393, 1
                $region107: #{tpu_custom_call.1} parent=93 // loop_footer_branch
                  %1392 = sbr.rel target = $region103
                $region108: #{tpu_custom_call.1} parent=93 // loop_exit
                  _
              $region94: #{tpu_custom_call.1} parent=71 // pred_fallthru
                _
              // Predicated region
              $region109: #{tpu_custom_call.1} parent=71 // pred_check
                _
              $region110: #{tpu_custom_call.1} parent=71 // pred_check_branch
                %1411 = sbr.rel target = $region112
              $region111: #{tpu_custom_call.1} parent=71 // pred_region
                _
              $region112: #{tpu_custom_call.1} parent=71 // pred_fallthru
                _
            $region72: #{tpu_custom_call.1} parent=67 // pred_fallthru
              _
            // Predicated region
            $region73: #{tpu_custom_call.1} parent=67 // pred_check
              _
            $region74: #{tpu_custom_call.1} parent=67 // pred_check_branch
              %1258 = sbr.rel target = $region76
            $region75: #{tpu_custom_call.1} parent=67 // pred_region
              %s1260 = sshrl.u32 %s1247, 4
              // While loop
              $region77: #{tpu_custom_call.1} parent=75 // loop_pre_header
                _
              $region78: #{tpu_custom_call.1} parent=75 // loop_header
                %s1262 = sphi 0, %s1264
                %p1263 = scmp.ge.s32.totalorder %s1262, %s1260
                %s1267 = sphi 0, %s1304
                %s1268 = sphi %s1240, %s1307
                %s1269 = sphi %s1251, %s1308
              $region79: #{tpu_custom_call.1} parent=75 // loop_header_branch
                %1266 = sbr.rel (%p1263) target = $region83
              $region80: #{tpu_custom_call.1} parent=75 // loop_body
                %v1270 = vld [vmem:[%s1268] sm:$0xff]
                %1271 = vst [vmem:[%s1269] sm:$0xff] %v1270
                %v1272 = vld [vmem:[%s1268 + $0x8] sm:$0xff]
                %1273 = vst [vmem:[%s1269 + $0x8] sm:$0xff] %v1272
                %v1274 = vld [vmem:[%s1268 + $0x10] sm:$0xff]
                %1275 = vst [vmem:[%s1269 + $0x10] sm:$0xff] %v1274
                %v1276 = vld [vmem:[%s1268 + $0x18] sm:$0xff]
                %1277 = vst [vmem:[%s1269 + $0x18] sm:$0xff] %v1276
                %v1278 = vld [vmem:[%s1268 + $0x20] sm:$0xff]
                %1279 = vst [vmem:[%s1269 + $0x20] sm:$0xff] %v1278
                %v1280 = vld [vmem:[%s1268 + $0x28] sm:$0xff]
                %1281 = vst [vmem:[%s1269 + $0x28] sm:$0xff] %v1280
                %v1282 = vld [vmem:[%s1268 + $0x30] sm:$0xff]
                %1283 = vst [vmem:[%s1269 + $0x30] sm:$0xff] %v1282
                %v1284 = vld [vmem:[%s1268 + $0x38] sm:$0xff]
                %1285 = vst [vmem:[%s1269 + $0x38] sm:$0xff] %v1284
                %v1286 = vld [vmem:[%s1268 + $0x40] sm:$0xff]
                %1287 = vst [vmem:[%s1269 + $0x40] sm:$0xff] %v1286
                %v1288 = vld [vmem:[%s1268 + $0x48] sm:$0xff]
                %1289 = vst [vmem:[%s1269 + $0x48] sm:$0xff] %v1288
                %v1290 = vld [vmem:[%s1268 + $0x50] sm:$0xff]
                %1291 = vst [vmem:[%s1269 + $0x50] sm:$0xff] %v1290
                %v1292 = vld [vmem:[%s1268 + $0x58] sm:$0xff]
                %1293 = vst [vmem:[%s1269 + $0x58] sm:$0xff] %v1292
                %v1294 = vld [vmem:[%s1268 + $0x60] sm:$0xff]
                %1295 = vst [vmem:[%s1269 + $0x60] sm:$0xff] %v1294
                %v1296 = vld [vmem:[%s1268 + $0x68] sm:$0xff]
                %1297 = vst [vmem:[%s1269 + $0x68] sm:$0xff] %v1296
                %v1298 = vld [vmem:[%s1268 + $0x70] sm:$0xff]
                %1299 = vst [vmem:[%s1269 + $0x70] sm:$0xff] %v1298
                %v1300 = vld [vmem:[%s1268 + $0x78] sm:$0xff]
                %1301 = vst [vmem:[%s1269 + $0x78] sm:$0xff] %v1300
                %s1302 = sadd.s32 1, %s1267
                %p1303 = scmp.ge.s32.totalorder %s1302, %s1260
                %s1304 = scalar_select %p1303, 0, %s1302
                %s1305 = smul.u32 %s1304, 128
                %s1306 = smul.u32 %s1304, 128
                %s1307 = scalar_lea.vmem %s1240, %s1305 [#allocation3]
                %s1308 = scalar_lea.vmem %s1251, %s1306
              $region81: #{tpu_custom_call.1} parent=75 // loop_footer
                %s1264 = sadd.s32 %s1262, 1
              $region82: #{tpu_custom_call.1} parent=75 // loop_footer_branch
                %1261 = sbr.rel target = $region78
              $region83: #{tpu_custom_call.1} parent=75 // loop_exit
                _
              %s1309 = sshrl.u32 %s1247, 4
              %s1310 = sand.u32 %s1247, 15
              %s1311 = smul.u32 %s1309, 16
              %s1312 = smul.u32 8, %s1311
              %s1313 = scalar_lea.vmem %s1240, %s1312 [#allocation3]
              %s1314 = smul.u32 8, %s1311
              %s1315 = scalar_lea.vmem %s1251, %s1314
              // While loop
              $region84: #{tpu_custom_call.1} parent=75 // loop_pre_header
                _
              $region85: #{tpu_custom_call.1} parent=75 // loop_header
                %s1317 = sphi 0, %s1319
                %p1318 = scmp.ge.s32.totalorder %s1317, %s1310
                %s1322 = sphi 0, %s1329
                %s1323 = sphi %s1313, %s1332
                %s1324 = sphi %s1315, %s1333
              $region86: #{tpu_custom_call.1} parent=75 // loop_header_branch
                %1321 = sbr.rel (%p1318) target = $region90
              $region87: #{tpu_custom_call.1} parent=75 // loop_body
                %v1325 = vld [vmem:[%s1323] sm:$0xff]
                %1326 = vst [vmem:[%s1324] sm:$0xff] %v1325
                %s1327 = sadd.s32 1, %s1322
                %p1328 = scmp.ge.s32.totalorder %s1327, %s1310
                %s1329 = scalar_select %p1328, 0, %s1327
                %s1330 = smul.u32 %s1329, 8
                %s1331 = smul.u32 %s1329, 8
                %s1332 = scalar_lea.vmem %s1313, %s1330 [#allocation3]
                %s1333 = scalar_lea.vmem %s1315, %s1331
              $region88: #{tpu_custom_call.1} parent=75 // loop_footer
                %s1319 = sadd.s32 %s1317, 1
              $region89: #{tpu_custom_call.1} parent=75 // loop_footer_branch
                %1316 = sbr.rel target = $region85
              $region90: #{tpu_custom_call.1} parent=75 // loop_exit
                _
            $region76: #{tpu_custom_call.1} parent=67 // pred_fallthru
              _
          $region68: #{tpu_custom_call.1} parent=63 // pred_fallthru
            _
          %1412 = vnop
        $region64: #{tpu_custom_call.1} parent=59 // pred_fallthru
          _
      $region60: #{tpu_custom_call.1} parent=5 // pred_fallthru
        _
      %p1413 = scmp.le.s32.totalorder 2, %s18
      // Predicated region
      $region113: #{tpu_custom_call.1} parent=5 // pred_check
        %p1414 = pneg %p1413
      $region114: #{tpu_custom_call.1} parent=5 // pred_check_branch
        %1416 = sbr.rel (%p1414) target = $region116
      $region115: #{tpu_custom_call.1} parent=5 // pred_region
        %s1417 = ssub.s32 %s18, 2
        // Predicated region
        $region117: #{tpu_custom_call.1} parent=115 // pred_check
          %p1418 = pneg %p272
        $region118: #{tpu_custom_call.1} parent=115 // pred_check_branch
          %1420 = sbr.rel (%p1418) target = $region120
        $region119: #{tpu_custom_call.1} parent=115 // pred_region
          %s1421 = sand.u32 %s257, 1
          %s1422 = sand.u32 %s257, 1
          %s1423 = smul.addr %s1422, 128
          %s1424 = scalar_lea.vmem [#allocation3], %s1423
        $region120: #{tpu_custom_call.1} parent=115 // pred_fallthru
          _
      $region116: #{tpu_custom_call.1} parent=5 // pred_fallthru
        _
    $region6: #{tpu_custom_call.1} parent=1 // loop_footer
      %s22 = sadd.s32 1, %s18
    $region7: #{tpu_custom_call.1} parent=1 // loop_footer_branch
      %17 = sbr.rel target = $region3
    $region8: #{tpu_custom_call.1} parent=1 // loop_exit
      _

</llo_original>
